<compile_context>
chip_gen: v7x
topology: tpu7x:2x2x1
jax: 0.10.0
libtpu: 0.0.40
codegen_flags: <defaults>
</compile_context>

<pallas_src>
import jax
import jax.numpy as jnp
from jax import lax
from jax.experimental import pallas as pl
from jax.experimental.pallas import tpu as pltpu


# ----------------------------------------------------------------------------
# Pallas kernel
# ----------------------------------------------------------------------------
def make_kernel(num_layers: int, B: int, H: int, eps: float):
    """Builds the fused CNN_LSTM forward kernel (num_layers, B, H are static)."""

    def kernel(*refs):
        x_ref, wc_ref, bc_ref = refs[0:3]
        lstm_refs = refs[3 : 3 + 3 * num_layers]
        idx = 3 + 3 * num_layers
        gamma_ref, beta_ref, wfc_ref, bfc_ref = refs[idx : idx + 4]
        out_ref = refs[idx + 4]
        seq_buf = refs[idx + 5]  # (B, H) VMEM scratch: per-layer hidden sequence

        # --- Conv1d (Lout == 1, so it is a matmul) + ReLU; MaxPool1d(k=1,s=1) is identity
        seq = jnp.maximum(
            jnp.dot(x_ref[...], wc_ref[...], preferred_element_type=jnp.float32)
            + bc_ref[...],
            0.0,
        )  # (B, Cout) == flattened conv output, kept as a value (vregs)

        # --- Stacked LSTM over the (unbatched) "sequence" of length B
        # TODO(synk): inter-layer dropout (p=0.2) of nn.LSTM in training mode is
        # not applied (eval-mode / inference semantics).
        for layer in range(num_layers):
            wih = lstm_refs[3 * layer][...]      # (Din, 4H)
            whh = lstm_refs[3 * layer + 1][...]  # (H, 4H)  (hoisted out of the loop)
            b = lstm_refs[3 * layer + 2][...]    # (1, 4H)  (b_ih + b_hh)

            # Input projection for all timesteps at once (MXU), held in vregs.
            xproj = (
                jnp.dot(seq, wih, preferred_element_type=jnp.float32) + b
            )  # (B, 4H)

            h = jnp.zeros((1, H), jnp.float32)
            c = jnp.zeros((1, H), jnp.float32)

            # Fully unrolled recurrence: h/c stay in vregs, xproj row t is a
            # static sublane slice; only the seq_buf row store touches VMEM and
            # it is off the h/c dependency chain.
            for t in range(B):
                gates = xproj[t : t + 1, :] + jnp.dot(
                    h, whh, preferred_element_type=jnp.float32
                )  # (1, 4H), PyTorch gate order: i, f, g, o
                sig = jax.nn.sigmoid(gates)  # one full-vreg EUP pass
                tnh = jnp.tanh(gates)        # one full-vreg EUP pass
                i_g = sig[:, 0:H]
                f_g = sig[:, H : 2 * H]
                o_g = sig[:, 3 * H : 4 * H]
                g_g = tnh[:, 2 * H : 3 * H]
                c = f_g * c + i_g * g_g
                h = o_g * jnp.tanh(c)
                seq_buf[t : t + 1, :] = h  # static-index row store (not read this layer)

            # Next layer input / BN input: one bulk load of the whole sequence.
            seq = seq_buf[...]  # (B, H)

        # --- BatchNorm1d over the batch axis (training-mode batch stats, biased var) + ReLU
        # folded into a single scale/shift: y = relu(seq * scale + shift)
        mean = jnp.mean(seq, axis=0, keepdims=True)
        var = jnp.mean((seq - mean) ** 2, axis=0, keepdims=True)
        scale = gamma_ref[...] * lax.rsqrt(var + eps)
        shift = beta_ref[...] - mean * scale
        y = jnp.maximum(seq * scale + shift, 0.0)

        # --- Linear + Sigmoid
        logits = (
            jnp.dot(y, wfc_ref[...], preferred_element_type=jnp.float32) + bfc_ref[...]
        )
        out_ref[...] = jax.nn.sigmoid(logits)

    return kernel


# ----------------------------------------------------------------------------
# Cost estimate (advisory hint for XLA scheduling around the custom call)
# ----------------------------------------------------------------------------
def _cost_estimate(B, Cin, K, Cout, H, num_layers, O):
    flops = 2.0 * B * (Cin * K) * Cout  # conv-as-matmul
    bytes_accessed = 4 * (B * Cin * K + Cin * K * Cout + Cout)
    transcendentals = 0.0
    din = Cout
    for _ in range(num_layers):
        flops += 2.0 * B * din * 4 * H          # input projection
        flops += 2.0 * B * H * 4 * H            # recurrence matmuls
        flops += 12.0 * B * H                   # gate elementwise (rough)
        transcendentals += B * (2 * 4 * H + H)  # sigmoid+tanh on gates, tanh(c)
        bytes_accessed += 4 * (din * 4 * H + H * 4 * H + 4 * H)
        din = H
    flops += 2.0 * B * H * O + 6.0 * B * H      # fc + batchnorm/relu
    transcendentals += B * O + H                # final sigmoid, rsqrt
    bytes_accessed += 4 * (2 * H + H * O + O + B * O)
    return pl.CostEstimate(
        flops=int(flops),
        transcendentals=int(transcendentals),
        bytes_accessed=int(bytes_accessed),
    )


# ----------------------------------------------------------------------------
# Wrapper
# ----------------------------------------------------------------------------
def cnn_lstm_forward(x, params, *, hidden_size, num_layers, out_channels, output_size):
    """x: (B, Cin, L) float32 with L == kernel_size (so conv output length == 1)."""
    B, Cin, L = x.shape
    H = hidden_size
    x_flat = x.reshape(B, Cin * L)  # row-major, matches (Cout, Cin*K) weight flatten

    inputs = [x_flat, params["wc_T"], params["bc"]]
    for l in range(num_layers):
        inputs += [params[f"wih_T_{l}"], params[f"whh_T_{l}"], params[f"b_{l}"]]
    inputs += [params["gamma"], params["beta"], params["wfc_T"], params["bfc"]]

    fn = pl.pallas_call(
        make_kernel(num_layers, B, H, 1e-5),
        out_shape=jax.ShapeDtypeStruct((B, output_size), jnp.float32),
        in_specs=[pl.BlockSpec(memory_space=pltpu.MemorySpace.VMEM)] * len(inputs),
        out_specs=pl.BlockSpec(memory_space=pltpu.MemorySpace.VMEM),
        scratch_shapes=[
            pltpu.VMEM((B, H), jnp.float32),  # per-layer hidden-state sequence
        ],
        cost_estimate=_cost_estimate(
            B, Cin, L, out_channels, H, num_layers, output_size
        ),
    )
    return fn(*inputs)


# ----------------------------------------------------------------------------
# Pure-JAX reference (for correctness check)
# ----------------------------------------------------------------------------
def reference_forward(x, params, *, hidden_size, num_layers):
    B, Cin, L = x.shape
    H = hidden_size
    x_flat = x.reshape(B, Cin * L)
    seq = jnp.maximum(x_flat @ params["wc_T"] + params["bc"], 0.0)
    for l in range(num_layers):
        xp = seq @ params[f"wih_T_{l}"] + params[f"b_{l}"]
        h = jnp.zeros((1, H), jnp.float32)
        c = jnp.zeros((1, H), jnp.float32)
        outs = []
        for t in range(B):
            gates = xp[t : t + 1] + h @ params[f"whh_T_{l}"]
            i_g = jax.nn.sigmoid(gates[:, 0:H])
            f_g = jax.nn.sigmoid(gates[:, H : 2 * H])
            g_g = jnp.tanh(gates[:, 2 * H : 3 * H])
            o_g = jax.nn.sigmoid(gates[:, 3 * H : 4 * H])
            c = f_g * c + i_g * g_g
            h = o_g * jnp.tanh(c)
            outs.append(h)
        seq = jnp.concatenate(outs, axis=0)
    mean = jnp.mean(seq, axis=0, keepdims=True)
    var = jnp.mean((seq - mean) ** 2, axis=0, keepdims=True)
    y = (seq - mean) / jnp.sqrt(var + 1e-5) * params["gamma"] + params["beta"]
    y = jnp.maximum(y, 0.0)
    return jax.nn.sigmoid(y @ params["wfc_T"] + params["bfc"])


# ----------------------------------------------------------------------------
# Main
# ----------------------------------------------------------------------------
if __name__ == "__main__":
    # Module hyper-parameters (kernel_size == L so that conv output length == 1,
    # which the PyTorch forward implicitly requires for the LSTM input size).
    B = 8                 # batch (== LSTM sequence length, since LSTM input is 2-D)
    Cin = 4               # cnn_input_channels
    K = 3                 # cnn_kernel_size (== spatial length L)
    Cout = 16             # cnn_out_channels (== LSTM input_size)
    H = 32                # hidden_size
    NUM_LAYERS = 2        # num_layers
    O = 4                 # output_size

    key = jax.random.PRNGKey(0)
    n_keys = 8 + 4 * NUM_LAYERS
    keys = iter(jax.random.split(key, n_keys))

    def u(k, shape, scale):
        return jax.random.uniform(k, shape, jnp.float32, -scale, scale)

    params = {}
    # Conv1d weight (Cout, Cin, K) flattened & transposed -> (Cin*K, Cout)
    sc = 1.0 / jnp.sqrt(Cin * K)
    params["wc_T"] = u(next(keys), (Cin * K, Cout), sc)
    params["bc"] = u(next(keys), (1, Cout), sc)
    # LSTM layers: W_ih (4H, Din) -> transposed (Din, 4H); W_hh (4H, H) -> (H, 4H); b = b_ih + b_hh
    for l in range(NUM_LAYERS):
        din = Cout if l == 0 else H
        sl = 1.0 / jnp.sqrt(H)
        params[f"wih_T_{l}"] = u(next(keys), (din, 4 * H), sl)
        params[f"whh_T_{l}"] = u(next(keys), (H, 4 * H), sl)
        params[f"b_{l}"] = u(next(keys), (1, 4 * H), sl) + u(next(keys), (1, 4 * H), sl)
    # BatchNorm1d affine params (PyTorch init: gamma=1, beta=0)
    params["gamma"] = jnp.ones((1, H), jnp.float32)
    params["beta"] = jnp.zeros((1, H), jnp.float32)
    # Linear (O, H) -> transposed (H, O)
    sf = 1.0 / jnp.sqrt(H)
    params["wfc_T"] = u(next(keys), (H, O), sf)
    params["bfc"] = u(next(keys), (1, O), sf)

    # Input: (B, Cin, L) with L == kernel_size
    x = jax.random.normal(next(keys), (B, Cin, K), jnp.float32)

    out = cnn_lstm_forward(
        x, params,
        hidden_size=H, num_layers=NUM_LAYERS, out_channels=Cout, output_size=O,
    )
    out = jax.block_until_ready(out)

    ref = reference_forward(x, params, hidden_size=H, num_layers=NUM_LAYERS)
    assert out.shape == (B, O), out.shape
    assert jnp.allclose(out, ref, rtol=1e-3, atol=1e-3), (
        f"max abs diff {jnp.max(jnp.abs(out - ref))}"
    )
    print("KERNEL_OK")
</pallas_src>

<mosaic_0001>
module attributes {stable_mosaic.version = 11 : i64} {
  func.func @kernel(%arg0: memref<8x12xf32, #tpu.memory_space<vmem>>, %arg1: memref<12x16xf32, #tpu.memory_space<vmem>>, %arg2: memref<1x16xf32, #tpu.memory_space<vmem>>, %arg3: memref<16x128xf32, #tpu.memory_space<vmem>>, %arg4: memref<32x128xf32, #tpu.memory_space<vmem>>, %arg5: memref<1x128xf32, #tpu.memory_space<vmem>>, %arg6: memref<32x128xf32, #tpu.memory_space<vmem>>, %arg7: memref<32x128xf32, #tpu.memory_space<vmem>>, %arg8: memref<1x128xf32, #tpu.memory_space<vmem>>, %arg9: memref<1x32xf32, #tpu.memory_space<vmem>>, %arg10: memref<1x32xf32, #tpu.memory_space<vmem>>, %arg11: memref<32x4xf32, #tpu.memory_space<vmem>>, %arg12: memref<1x4xf32, #tpu.memory_space<vmem>>, %arg13: memref<8x4xf32, #tpu.memory_space<vmem>>, %arg14: memref<8x32xf32, #tpu.memory_space<vmem>>) attributes {dimension_semantics = [], scalar_prefetch = 0 : i64, scratch_operands = 1 : i64, tpu.core_type = #tpu.core_type<tc>} {
    %c0 = arith.constant 0 : index
    %c0_0 = arith.constant 0 : index
    %0 = vector.load %arg0[%c0, %c0_0] : memref<8x12xf32, #tpu.memory_space<vmem>>, vector<8x12xf32>
    %c0_1 = arith.constant 0 : index
    %c0_2 = arith.constant 0 : index
    %1 = vector.load %arg1[%c0_1, %c0_2] : memref<12x16xf32, #tpu.memory_space<vmem>>, vector<12x16xf32>
    %cst = arith.constant dense<0.000000e+00> : vector<8x16xf32>
    %2 = tpu.matmul %0, %1, %cst {dimension_numbers = #tpu.dot_dimension_numbers<[1], [0], [0], [1], [0, 0, 1, 1], [], []>} : vector<8x12xf32>, vector<12x16xf32>, vector<8x16xf32> -> vector<8x16xf32>
    %c0_3 = arith.constant 0 : index
    %c0_4 = arith.constant 0 : index
    %3 = vector.load %arg2[%c0_3, %c0_4] : memref<1x16xf32, #tpu.memory_space<vmem>>, vector<1x16xf32>
    %4 = vector.broadcast %3 : vector<1x16xf32> to vector<8x16xf32>
    %5 = arith.addf %2, %4 : vector<8x16xf32>
    %cst_5 = arith.constant 0.000000e+00 : f32
    %6 = vector.broadcast %cst_5 : f32 to vector<8x16xf32>
    %7 = arith.maximumf %5, %6 : vector<8x16xf32>
    %c0_6 = arith.constant 0 : index
    %c0_7 = arith.constant 0 : index
    %8 = vector.load %arg3[%c0_6, %c0_7] : memref<16x128xf32, #tpu.memory_space<vmem>>, vector<16x128xf32>
    %c0_8 = arith.constant 0 : index
    %c0_9 = arith.constant 0 : index
    %9 = vector.load %arg4[%c0_8, %c0_9] : memref<32x128xf32, #tpu.memory_space<vmem>>, vector<32x128xf32>
    %c0_10 = arith.constant 0 : index
    %c0_11 = arith.constant 0 : index
    %10 = vector.load %arg5[%c0_10, %c0_11] : memref<1x128xf32, #tpu.memory_space<vmem>>, vector<1x128xf32>
    %cst_12 = arith.constant dense<0.000000e+00> : vector<8x128xf32>
    %11 = tpu.matmul %7, %8, %cst_12 {dimension_numbers = #tpu.dot_dimension_numbers<[1], [0], [0], [1], [0, 0, 1, 1], [], []>} : vector<8x16xf32>, vector<16x128xf32>, vector<8x128xf32> -> vector<8x128xf32>
    %12 = vector.broadcast %10 : vector<1x128xf32> to vector<8x128xf32>
    %13 = arith.addf %11, %12 : vector<8x128xf32>
    %cst_13 = arith.constant 0.000000e+00 : f32
    %14 = vector.broadcast %cst_13 : f32 to vector<1x32xf32>
    %cst_14 = arith.constant 0.000000e+00 : f32
    %15 = vector.broadcast %cst_14 : f32 to vector<1x32xf32>
    %16 = vector.extract_strided_slice %13 {offsets = [0, 0], sizes = [1, 128], strides = [1, 1]} : vector<8x128xf32> to vector<1x128xf32>
    %cst_15 = arith.constant dense<0.000000e+00> : vector<1x128xf32>
    %17 = tpu.matmul %14, %9, %cst_15 {dimension_numbers = #tpu.dot_dimension_numbers<[1], [0], [0], [1], [0, 0, 1, 1], [], []>} : vector<1x32xf32>, vector<32x128xf32>, vector<1x128xf32> -> vector<1x128xf32>
    %18 = arith.addf %16, %17 : vector<1x128xf32>
    %19 = arith.negf %18 : vector<1x128xf32>
    %20 = math.exp %19 : vector<1x128xf32>
    %cst_16 = arith.constant 1.000000e+00 : f32
    %21 = vector.broadcast %cst_16 : f32 to vector<1x128xf32>
    %22 = arith.addf %21, %20 : vector<1x128xf32>
    %23 = arith.divf %21, %22 : vector<1x128xf32>
    %24 = math.tanh %18 : vector<1x128xf32>
    %25 = vector.extract_strided_slice %23 {offsets = [0, 0], sizes = [1, 32], strides = [1, 1]} : vector<1x128xf32> to vector<1x32xf32>
    %26 = vector.extract_strided_slice %23 {offsets = [0, 32], sizes = [1, 32], strides = [1, 1]} : vector<1x128xf32> to vector<1x32xf32>
    %27 = vector.extract_strided_slice %23 {offsets = [0, 96], sizes = [1, 32], strides = [1, 1]} : vector<1x128xf32> to vector<1x32xf32>
    %28 = vector.extract_strided_slice %24 {offsets = [0, 64], sizes = [1, 32], strides = [1, 1]} : vector<1x128xf32> to vector<1x32xf32>
    %29 = arith.mulf %26, %15 : vector<1x32xf32>
    %30 = arith.mulf %25, %28 : vector<1x32xf32>
    %31 = arith.addf %29, %30 : vector<1x32xf32>
    %32 = math.tanh %31 : vector<1x32xf32>
    %33 = arith.mulf %27, %32 : vector<1x32xf32>
    %c0_17 = arith.constant 0 : index
    %c0_18 = arith.constant 0 : index
    %34 = vector.load %arg14[%c0_17, %c0_18] : memref<8x32xf32, #tpu.memory_space<vmem>>, vector<1x32xf32>
    tpu.vector_store %arg14[%c0_17, %c0_18], %33 {strides = array<i32>} : memref<8x32xf32, #tpu.memory_space<vmem>>, vector<1x32xf32>,
    %35 = vector.extract_strided_slice %13 {offsets = [1, 0], sizes = [1, 128], strides = [1, 1]} : vector<8x128xf32> to vector<1x128xf32>
    %cst_19 = arith.constant dense<0.000000e+00> : vector<1x128xf32>
    %36 = tpu.matmul %33, %9, %cst_19 {dimension_numbers = #tpu.dot_dimension_numbers<[1], [0], [0], [1], [0, 0, 1, 1], [], []>} : vector<1x32xf32>, vector<32x128xf32>, vector<1x128xf32> -> vector<1x128xf32>
    %37 = arith.addf %35, %36 : vector<1x128xf32>
    %38 = arith.negf %37 : vector<1x128xf32>
    %39 = math.exp %38 : vector<1x128xf32>
    %cst_20 = arith.constant 1.000000e+00 : f32
    %40 = vector.broadcast %cst_20 : f32 to vector<1x128xf32>
    %41 = arith.addf %40, %39 : vector<1x128xf32>
    %42 = arith.divf %40, %41 : vector<1x128xf32>
    %43 = math.tanh %37 : vector<1x128xf32>
    %44 = vector.extract_strided_slice %42 {offsets = [0, 0], sizes = [1, 32], strides = [1, 1]} : vector<1x128xf32> to vector<1x32xf32>
    %45 = vector.extract_strided_slice %42 {offsets = [0, 32], sizes = [1, 32], strides = [1, 1]} : vector<1x128xf32> to vector<1x32xf32>
    %46 = vector.extract_strided_slice %42 {offsets = [0, 96], sizes = [1, 32], strides = [1, 1]} : vector<1x128xf32> to vector<1x32xf32>
    %47 = vector.extract_strided_slice %43 {offsets = [0, 64], sizes = [1, 32], strides = [1, 1]} : vector<1x128xf32> to vector<1x32xf32>
    %48 = arith.mulf %45, %31 : vector<1x32xf32>
    %49 = arith.mulf %44, %47 : vector<1x32xf32>
    %50 = arith.addf %48, %49 : vector<1x32xf32>
    %51 = math.tanh %50 : vector<1x32xf32>
    %52 = arith.mulf %46, %51 : vector<1x32xf32>
    %c1 = arith.constant 1 : index
    %c0_21 = arith.constant 0 : index
    %53 = vector.load %arg14[%c1, %c0_21] : memref<8x32xf32, #tpu.memory_space<vmem>>, vector<1x32xf32>
    tpu.vector_store %arg14[%c1, %c0_21], %52 {strides = array<i32>} : memref<8x32xf32, #tpu.memory_space<vmem>>, vector<1x32xf32>,
    %54 = vector.extract_strided_slice %13 {offsets = [2, 0], sizes = [1, 128], strides = [1, 1]} : vector<8x128xf32> to vector<1x128xf32>
    %cst_22 = arith.constant dense<0.000000e+00> : vector<1x128xf32>
    %55 = tpu.matmul %52, %9, %cst_22 {dimension_numbers = #tpu.dot_dimension_numbers<[1], [0], [0], [1], [0, 0, 1, 1], [], []>} : vector<1x32xf32>, vector<32x128xf32>, vector<1x128xf32> -> vector<1x128xf32>
    %56 = arith.addf %54, %55 : vector<1x128xf32>
    %57 = arith.negf %56 : vector<1x128xf32>
    %58 = math.exp %57 : vector<1x128xf32>
    %cst_23 = arith.constant 1.000000e+00 : f32
    %59 = vector.broadcast %cst_23 : f32 to vector<1x128xf32>
    %60 = arith.addf %59, %58 : vector<1x128xf32>
    %61 = arith.divf %59, %60 : vector<1x128xf32>
    %62 = math.tanh %56 : vector<1x128xf32>
    %63 = vector.extract_strided_slice %61 {offsets = [0, 0], sizes = [1, 32], strides = [1, 1]} : vector<1x128xf32> to vector<1x32xf32>
    %64 = vector.extract_strided_slice %61 {offsets = [0, 32], sizes = [1, 32], strides = [1, 1]} : vector<1x128xf32> to vector<1x32xf32>
    %65 = vector.extract_strided_slice %61 {offsets = [0, 96], sizes = [1, 32], strides = [1, 1]} : vector<1x128xf32> to vector<1x32xf32>
    %66 = vector.extract_strided_slice %62 {offsets = [0, 64], sizes = [1, 32], strides = [1, 1]} : vector<1x128xf32> to vector<1x32xf32>
    %67 = arith.mulf %64, %50 : vector<1x32xf32>
    %68 = arith.mulf %63, %66 : vector<1x32xf32>
    %69 = arith.addf %67, %68 : vector<1x32xf32>
    %70 = math.tanh %69 : vector<1x32xf32>
    %71 = arith.mulf %65, %70 : vector<1x32xf32>
    %c2 = arith.constant 2 : index
    %c0_24 = arith.constant 0 : index
    %72 = vector.load %arg14[%c2, %c0_24] : memref<8x32xf32, #tpu.memory_space<vmem>>, vector<1x32xf32>
    tpu.vector_store %arg14[%c2, %c0_24], %71 {strides = array<i32>} : memref<8x32xf32, #tpu.memory_space<vmem>>, vector<1x32xf32>,
    %73 = vector.extract_strided_slice %13 {offsets = [3, 0], sizes = [1, 128], strides = [1, 1]} : vector<8x128xf32> to vector<1x128xf32>
    %cst_25 = arith.constant dense<0.000000e+00> : vector<1x128xf32>
    %74 = tpu.matmul %71, %9, %cst_25 {dimension_numbers = #tpu.dot_dimension_numbers<[1], [0], [0], [1], [0, 0, 1, 1], [], []>} : vector<1x32xf32>, vector<32x128xf32>, vector<1x128xf32> -> vector<1x128xf32>
    %75 = arith.addf %73, %74 : vector<1x128xf32>
    %76 = arith.negf %75 : vector<1x128xf32>
    %77 = math.exp %76 : vector<1x128xf32>
    %cst_26 = arith.constant 1.000000e+00 : f32
    %78 = vector.broadcast %cst_26 : f32 to vector<1x128xf32>
    %79 = arith.addf %78, %77 : vector<1x128xf32>
    %80 = arith.divf %78, %79 : vector<1x128xf32>
    %81 = math.tanh %75 : vector<1x128xf32>
    %82 = vector.extract_strided_slice %80 {offsets = [0, 0], sizes = [1, 32], strides = [1, 1]} : vector<1x128xf32> to vector<1x32xf32>
    %83 = vector.extract_strided_slice %80 {offsets = [0, 32], sizes = [1, 32], strides = [1, 1]} : vector<1x128xf32> to vector<1x32xf32>
    %84 = vector.extract_strided_slice %80 {offsets = [0, 96], sizes = [1, 32], strides = [1, 1]} : vector<1x128xf32> to vector<1x32xf32>
    %85 = vector.extract_strided_slice %81 {offsets = [0, 64], sizes = [1, 32], strides = [1, 1]} : vector<1x128xf32> to vector<1x32xf32>
    %86 = arith.mulf %83, %69 : vector<1x32xf32>
    %87 = arith.mulf %82, %85 : vector<1x32xf32>
    %88 = arith.addf %86, %87 : vector<1x32xf32>
    %89 = math.tanh %88 : vector<1x32xf32>
    %90 = arith.mulf %84, %89 : vector<1x32xf32>
    %c3 = arith.constant 3 : index
    %c0_27 = arith.constant 0 : index
    %91 = vector.load %arg14[%c3, %c0_27] : memref<8x32xf32, #tpu.memory_space<vmem>>, vector<1x32xf32>
    tpu.vector_store %arg14[%c3, %c0_27], %90 {strides = array<i32>} : memref<8x32xf32, #tpu.memory_space<vmem>>, vector<1x32xf32>,
    %92 = vector.extract_strided_slice %13 {offsets = [4, 0], sizes = [1, 128], strides = [1, 1]} : vector<8x128xf32> to vector<1x128xf32>
    %cst_28 = arith.constant dense<0.000000e+00> : vector<1x128xf32>
    %93 = tpu.matmul %90, %9, %cst_28 {dimension_numbers = #tpu.dot_dimension_numbers<[1], [0], [0], [1], [0, 0, 1, 1], [], []>} : vector<1x32xf32>, vector<32x128xf32>, vector<1x128xf32> -> vector<1x128xf32>
    %94 = arith.addf %92, %93 : vector<1x128xf32>
    %95 = arith.negf %94 : vector<1x128xf32>
    %96 = math.exp %95 : vector<1x128xf32>
    %cst_29 = arith.constant 1.000000e+00 : f32
    %97 = vector.broadcast %cst_29 : f32 to vector<1x128xf32>
    %98 = arith.addf %97, %96 : vector<1x128xf32>
    %99 = arith.divf %97, %98 : vector<1x128xf32>
    %100 = math.tanh %94 : vector<1x128xf32>
    %101 = vector.extract_strided_slice %99 {offsets = [0, 0], sizes = [1, 32], strides = [1, 1]} : vector<1x128xf32> to vector<1x32xf32>
    %102 = vector.extract_strided_slice %99 {offsets = [0, 32], sizes = [1, 32], strides = [1, 1]} : vector<1x128xf32> to vector<1x32xf32>
    %103 = vector.extract_strided_slice %99 {offsets = [0, 96], sizes = [1, 32], strides = [1, 1]} : vector<1x128xf32> to vector<1x32xf32>
    %104 = vector.extract_strided_slice %100 {offsets = [0, 64], sizes = [1, 32], strides = [1, 1]} : vector<1x128xf32> to vector<1x32xf32>
    %105 = arith.mulf %102, %88 : vector<1x32xf32>
    %106 = arith.mulf %101, %104 : vector<1x32xf32>
    %107 = arith.addf %105, %106 : vector<1x32xf32>
    %108 = math.tanh %107 : vector<1x32xf32>
    %109 = arith.mulf %103, %108 : vector<1x32xf32>
    %c4 = arith.constant 4 : index
    %c0_30 = arith.constant 0 : index
    %110 = vector.load %arg14[%c4, %c0_30] : memref<8x32xf32, #tpu.memory_space<vmem>>, vector<1x32xf32>
    tpu.vector_store %arg14[%c4, %c0_30], %109 {strides = array<i32>} : memref<8x32xf32, #tpu.memory_space<vmem>>, vector<1x32xf32>,
    %111 = vector.extract_strided_slice %13 {offsets = [5, 0], sizes = [1, 128], strides = [1, 1]} : vector<8x128xf32> to vector<1x128xf32>
    %cst_31 = arith.constant dense<0.000000e+00> : vector<1x128xf32>
    %112 = tpu.matmul %109, %9, %cst_31 {dimension_numbers = #tpu.dot_dimension_numbers<[1], [0], [0], [1], [0, 0, 1, 1], [], []>} : vector<1x32xf32>, vector<32x128xf32>, vector<1x128xf32> -> vector<1x128xf32>
    %113 = arith.addf %111, %112 : vector<1x128xf32>
    %114 = arith.negf %113 : vector<1x128xf32>
    %115 = math.exp %114 : vector<1x128xf32>
    %cst_32 = arith.constant 1.000000e+00 : f32
    %116 = vector.broadcast %cst_32 : f32 to vector<1x128xf32>
    %117 = arith.addf %116, %115 : vector<1x128xf32>
    %118 = arith.divf %116, %117 : vector<1x128xf32>
    %119 = math.tanh %113 : vector<1x128xf32>
    %120 = vector.extract_strided_slice %118 {offsets = [0, 0], sizes = [1, 32], strides = [1, 1]} : vector<1x128xf32> to vector<1x32xf32>
    %121 = vector.extract_strided_slice %118 {offsets = [0, 32], sizes = [1, 32], strides = [1, 1]} : vector<1x128xf32> to vector<1x32xf32>
    %122 = vector.extract_strided_slice %118 {offsets = [0, 96], sizes = [1, 32], strides = [1, 1]} : vector<1x128xf32> to vector<1x32xf32>
    %123 = vector.extract_strided_slice %119 {offsets = [0, 64], sizes = [1, 32], strides = [1, 1]} : vector<1x128xf32> to vector<1x32xf32>
    %124 = arith.mulf %121, %107 : vector<1x32xf32>
    %125 = arith.mulf %120, %123 : vector<1x32xf32>
    %126 = arith.addf %124, %125 : vector<1x32xf32>
    %127 = math.tanh %126 : vector<1x32xf32>
    %128 = arith.mulf %122, %127 : vector<1x32xf32>
    %c5 = arith.constant 5 : index
    %c0_33 = arith.constant 0 : index
    %129 = vector.load %arg14[%c5, %c0_33] : memref<8x32xf32, #tpu.memory_space<vmem>>, vector<1x32xf32>
    tpu.vector_store %arg14[%c5, %c0_33], %128 {strides = array<i32>} : memref<8x32xf32, #tpu.memory_space<vmem>>, vector<1x32xf32>,
    %130 = vector.extract_strided_slice %13 {offsets = [6, 0], sizes = [1, 128], strides = [1, 1]} : vector<8x128xf32> to vector<1x128xf32>
    %cst_34 = arith.constant dense<0.000000e+00> : vector<1x128xf32>
    %131 = tpu.matmul %128, %9, %cst_34 {dimension_numbers = #tpu.dot_dimension_numbers<[1], [0], [0], [1], [0, 0, 1, 1], [], []>} : vector<1x32xf32>, vector<32x128xf32>, vector<1x128xf32> -> vector<1x128xf32>
    %132 = arith.addf %130, %131 : vector<1x128xf32>
    %133 = arith.negf %132 : vector<1x128xf32>
    %134 = math.exp %133 : vector<1x128xf32>
    %cst_35 = arith.constant 1.000000e+00 : f32
    %135 = vector.broadcast %cst_35 : f32 to vector<1x128xf32>
    %136 = arith.addf %135, %134 : vector<1x128xf32>
    %137 = arith.divf %135, %136 : vector<1x128xf32>
    %138 = math.tanh %132 : vector<1x128xf32>
    %139 = vector.extract_strided_slice %137 {offsets = [0, 0], sizes = [1, 32], strides = [1, 1]} : vector<1x128xf32> to vector<1x32xf32>
    %140 = vector.extract_strided_slice %137 {offsets = [0, 32], sizes = [1, 32], strides = [1, 1]} : vector<1x128xf32> to vector<1x32xf32>
    %141 = vector.extract_strided_slice %137 {offsets = [0, 96], sizes = [1, 32], strides = [1, 1]} : vector<1x128xf32> to vector<1x32xf32>
    %142 = vector.extract_strided_slice %138 {offsets = [0, 64], sizes = [1, 32], strides = [1, 1]} : vector<1x128xf32> to vector<1x32xf32>
    %143 = arith.mulf %140, %126 : vector<1x32xf32>
    %144 = arith.mulf %139, %142 : vector<1x32xf32>
    %145 = arith.addf %143, %144 : vector<1x32xf32>
    %146 = math.tanh %145 : vector<1x32xf32>
    %147 = arith.mulf %141, %146 : vector<1x32xf32>
    %c6 = arith.constant 6 : index
    %c0_36 = arith.constant 0 : index
    %148 = vector.load %arg14[%c6, %c0_36] : memref<8x32xf32, #tpu.memory_space<vmem>>, vector<1x32xf32>
    tpu.vector_store %arg14[%c6, %c0_36], %147 {strides = array<i32>} : memref<8x32xf32, #tpu.memory_space<vmem>>, vector<1x32xf32>,
    %149 = vector.extract_strided_slice %13 {offsets = [7, 0], sizes = [1, 128], strides = [1, 1]} : vector<8x128xf32> to vector<1x128xf32>
    %cst_37 = arith.constant dense<0.000000e+00> : vector<1x128xf32>
    %150 = tpu.matmul %147, %9, %cst_37 {dimension_numbers = #tpu.dot_dimension_numbers<[1], [0], [0], [1], [0, 0, 1, 1], [], []>} : vector<1x32xf32>, vector<32x128xf32>, vector<1x128xf32> -> vector<1x128xf32>
    %151 = arith.addf %149, %150 : vector<1x128xf32>
    %152 = arith.negf %151 : vector<1x128xf32>
    %153 = math.exp %152 : vector<1x128xf32>
    %cst_38 = arith.constant 1.000000e+00 : f32
    %154 = vector.broadcast %cst_38 : f32 to vector<1x128xf32>
    %155 = arith.addf %154, %153 : vector<1x128xf32>
    %156 = arith.divf %154, %155 : vector<1x128xf32>
    %157 = math.tanh %151 : vector<1x128xf32>
    %158 = vector.extract_strided_slice %156 {offsets = [0, 0], sizes = [1, 32], strides = [1, 1]} : vector<1x128xf32> to vector<1x32xf32>
    %159 = vector.extract_strided_slice %156 {offsets = [0, 32], sizes = [1, 32], strides = [1, 1]} : vector<1x128xf32> to vector<1x32xf32>
    %160 = vector.extract_strided_slice %156 {offsets = [0, 96], sizes = [1, 32], strides = [1, 1]} : vector<1x128xf32> to vector<1x32xf32>
    %161 = vector.extract_strided_slice %157 {offsets = [0, 64], sizes = [1, 32], strides = [1, 1]} : vector<1x128xf32> to vector<1x32xf32>
    %162 = arith.mulf %159, %145 : vector<1x32xf32>
    %163 = arith.mulf %158, %161 : vector<1x32xf32>
    %164 = arith.addf %162, %163 : vector<1x32xf32>
    %165 = math.tanh %164 : vector<1x32xf32>
    %166 = arith.mulf %160, %165 : vector<1x32xf32>
    %c7 = arith.constant 7 : index
    %c0_39 = arith.constant 0 : index
    %167 = vector.load %arg14[%c7, %c0_39] : memref<8x32xf32, #tpu.memory_space<vmem>>, vector<1x32xf32>
    tpu.vector_store %arg14[%c7, %c0_39], %166 {strides = array<i32>} : memref<8x32xf32, #tpu.memory_space<vmem>>, vector<1x32xf32>,
    %c0_40 = arith.constant 0 : index
    %c0_41 = arith.constant 0 : index
    %168 = vector.load %arg14[%c0_40, %c0_41] : memref<8x32xf32, #tpu.memory_space<vmem>>, vector<8x32xf32>
    %c0_42 = arith.constant 0 : index
    %c0_43 = arith.constant 0 : index
    %169 = vector.load %arg6[%c0_42, %c0_43] : memref<32x128xf32, #tpu.memory_space<vmem>>, vector<32x128xf32>
    %c0_44 = arith.constant 0 : index
    %c0_45 = arith.constant 0 : index
    %170 = vector.load %arg7[%c0_44, %c0_45] : memref<32x128xf32, #tpu.memory_space<vmem>>, vector<32x128xf32>
    %c0_46 = arith.constant 0 : index
    %c0_47 = arith.constant 0 : index
    %171 = vector.load %arg8[%c0_46, %c0_47] : memref<1x128xf32, #tpu.memory_space<vmem>>, vector<1x128xf32>
    %cst_48 = arith.constant dense<0.000000e+00> : vector<8x128xf32>
    %172 = tpu.matmul %168, %169, %cst_48 {dimension_numbers = #tpu.dot_dimension_numbers<[1], [0], [0], [1], [0, 0, 1, 1], [], []>} : vector<8x32xf32>, vector<32x128xf32>, vector<8x128xf32> -> vector<8x128xf32>
    %173 = vector.broadcast %171 : vector<1x128xf32> to vector<8x128xf32>
    %174 = arith.addf %172, %173 : vector<8x128xf32>
    %cst_49 = arith.constant 0.000000e+00 : f32
    %175 = vector.broadcast %cst_49 : f32 to vector<1x32xf32>
    %cst_50 = arith.constant 0.000000e+00 : f32
    %176 = vector.broadcast %cst_50 : f32 to vector<1x32xf32>
    %177 = vector.extract_strided_slice %174 {offsets = [0, 0], sizes = [1, 128], strides = [1, 1]} : vector<8x128xf32> to vector<1x128xf32>
    %cst_51 = arith.constant dense<0.000000e+00> : vector<1x128xf32>
    %178 = tpu.matmul %175, %170, %cst_51 {dimension_numbers = #tpu.dot_dimension_numbers<[1], [0], [0], [1], [0, 0, 1, 1], [], []>} : vector<1x32xf32>, vector<32x128xf32>, vector<1x128xf32> -> vector<1x128xf32>
    %179 = arith.addf %177, %178 : vector<1x128xf32>
    %180 = arith.negf %179 : vector<1x128xf32>
    %181 = math.exp %180 : vector<1x128xf32>
    %cst_52 = arith.constant 1.000000e+00 : f32
    %182 = vector.broadcast %cst_52 : f32 to vector<1x128xf32>
    %183 = arith.addf %182, %181 : vector<1x128xf32>
    %184 = arith.divf %182, %183 : vector<1x128xf32>
    %185 = math.tanh %179 : vector<1x128xf32>
    %186 = vector.extract_strided_slice %184 {offsets = [0, 0], sizes = [1, 32], strides = [1, 1]} : vector<1x128xf32> to vector<1x32xf32>
    %187 = vector.extract_strided_slice %184 {offsets = [0, 32], sizes = [1, 32], strides = [1, 1]} : vector<1x128xf32> to vector<1x32xf32>
    %188 = vector.extract_strided_slice %184 {offsets = [0, 96], sizes = [1, 32], strides = [1, 1]} : vector<1x128xf32> to vector<1x32xf32>
    %189 = vector.extract_strided_slice %185 {offsets = [0, 64], sizes = [1, 32], strides = [1, 1]} : vector<1x128xf32> to vector<1x32xf32>
    %190 = arith.mulf %187, %176 : vector<1x32xf32>
    %191 = arith.mulf %186, %189 : vector<1x32xf32>
    %192 = arith.addf %190, %191 : vector<1x32xf32>
    %193 = math.tanh %192 : vector<1x32xf32>
    %194 = arith.mulf %188, %193 : vector<1x32xf32>
    %c0_53 = arith.constant 0 : index
    %c0_54 = arith.constant 0 : index
    %195 = vector.load %arg14[%c0_53, %c0_54] : memref<8x32xf32, #tpu.memory_space<vmem>>, vector<1x32xf32>
    tpu.vector_store %arg14[%c0_53, %c0_54], %194 {strides = array<i32>} : memref<8x32xf32, #tpu.memory_space<vmem>>, vector<1x32xf32>,
    %196 = vector.extract_strided_slice %174 {offsets = [1, 0], sizes = [1, 128], strides = [1, 1]} : vector<8x128xf32> to vector<1x128xf32>
    %cst_55 = arith.constant dense<0.000000e+00> : vector<1x128xf32>
    %197 = tpu.matmul %194, %170, %cst_55 {dimension_numbers = #tpu.dot_dimension_numbers<[1], [0], [0], [1], [0, 0, 1, 1], [], []>} : vector<1x32xf32>, vector<32x128xf32>, vector<1x128xf32> -> vector<1x128xf32>
    %198 = arith.addf %196, %197 : vector<1x128xf32>
    %199 = arith.negf %198 : vector<1x128xf32>
    %200 = math.exp %199 : vector<1x128xf32>
    %cst_56 = arith.constant 1.000000e+00 : f32
    %201 = vector.broadcast %cst_56 : f32 to vector<1x128xf32>
    %202 = arith.addf %201, %200 : vector<1x128xf32>
    %203 = arith.divf %201, %202 : vector<1x128xf32>
    %204 = math.tanh %198 : vector<1x128xf32>
    %205 = vector.extract_strided_slice %203 {offsets = [0, 0], sizes = [1, 32], strides = [1, 1]} : vector<1x128xf32> to vector<1x32xf32>
    %206 = vector.extract_strided_slice %203 {offsets = [0, 32], sizes = [1, 32], strides = [1, 1]} : vector<1x128xf32> to vector<1x32xf32>
    %207 = vector.extract_strided_slice %203 {offsets = [0, 96], sizes = [1, 32], strides = [1, 1]} : vector<1x128xf32> to vector<1x32xf32>
    %208 = vector.extract_strided_slice %204 {offsets = [0, 64], sizes = [1, 32], strides = [1, 1]} : vector<1x128xf32> to vector<1x32xf32>
    %209 = arith.mulf %206, %192 : vector<1x32xf32>
    %210 = arith.mulf %205, %208 : vector<1x32xf32>
    %211 = arith.addf %209, %210 : vector<1x32xf32>
    %212 = math.tanh %211 : vector<1x32xf32>
    %213 = arith.mulf %207, %212 : vector<1x32xf32>
    %c1_57 = arith.constant 1 : index
    %c0_58 = arith.constant 0 : index
    %214 = vector.load %arg14[%c1_57, %c0_58] : memref<8x32xf32, #tpu.memory_space<vmem>>, vector<1x32xf32>
    tpu.vector_store %arg14[%c1_57, %c0_58], %213 {strides = array<i32>} : memref<8x32xf32, #tpu.memory_space<vmem>>, vector<1x32xf32>,
    %215 = vector.extract_strided_slice %174 {offsets = [2, 0], sizes = [1, 128], strides = [1, 1]} : vector<8x128xf32> to vector<1x128xf32>
    %cst_59 = arith.constant dense<0.000000e+00> : vector<1x128xf32>
    %216 = tpu.matmul %213, %170, %cst_59 {dimension_numbers = #tpu.dot_dimension_numbers<[1], [0], [0], [1], [0, 0, 1, 1], [], []>} : vector<1x32xf32>, vector<32x128xf32>, vector<1x128xf32> -> vector<1x128xf32>
    %217 = arith.addf %215, %216 : vector<1x128xf32>
    %218 = arith.negf %217 : vector<1x128xf32>
    %219 = math.exp %218 : vector<1x128xf32>
    %cst_60 = arith.constant 1.000000e+00 : f32
    %220 = vector.broadcast %cst_60 : f32 to vector<1x128xf32>
    %221 = arith.addf %220, %219 : vector<1x128xf32>
    %222 = arith.divf %220, %221 : vector<1x128xf32>
    %223 = math.tanh %217 : vector<1x128xf32>
    %224 = vector.extract_strided_slice %222 {offsets = [0, 0], sizes = [1, 32], strides = [1, 1]} : vector<1x128xf32> to vector<1x32xf32>
    %225 = vector.extract_strided_slice %222 {offsets = [0, 32], sizes = [1, 32], strides = [1, 1]} : vector<1x128xf32> to vector<1x32xf32>
    %226 = vector.extract_strided_slice %222 {offsets = [0, 96], sizes = [1, 32], strides = [1, 1]} : vector<1x128xf32> to vector<1x32xf32>
    %227 = vector.extract_strided_slice %223 {offsets = [0, 64], sizes = [1, 32], strides = [1, 1]} : vector<1x128xf32> to vector<1x32xf32>
    %228 = arith.mulf %225, %211 : vector<1x32xf32>
    %229 = arith.mulf %224, %227 : vector<1x32xf32>
    %230 = arith.addf %228, %229 : vector<1x32xf32>
    %231 = math.tanh %230 : vector<1x32xf32>
    %232 = arith.mulf %226, %231 : vector<1x32xf32>
    %c2_61 = arith.constant 2 : index
    %c0_62 = arith.constant 0 : index
    %233 = vector.load %arg14[%c2_61, %c0_62] : memref<8x32xf32, #tpu.memory_space<vmem>>, vector<1x32xf32>
    tpu.vector_store %arg14[%c2_61, %c0_62], %232 {strides = array<i32>} : memref<8x32xf32, #tpu.memory_space<vmem>>, vector<1x32xf32>,
    %234 = vector.extract_strided_slice %174 {offsets = [3, 0], sizes = [1, 128], strides = [1, 1]} : vector<8x128xf32> to vector<1x128xf32>
    %cst_63 = arith.constant dense<0.000000e+00> : vector<1x128xf32>
    %235 = tpu.matmul %232, %170, %cst_63 {dimension_numbers = #tpu.dot_dimension_numbers<[1], [0], [0], [1], [0, 0, 1, 1], [], []>} : vector<1x32xf32>, vector<32x128xf32>, vector<1x128xf32> -> vector<1x128xf32>
    %236 = arith.addf %234, %235 : vector<1x128xf32>
    %237 = arith.negf %236 : vector<1x128xf32>
    %238 = math.exp %237 : vector<1x128xf32>
    %cst_64 = arith.constant 1.000000e+00 : f32
    %239 = vector.broadcast %cst_64 : f32 to vector<1x128xf32>
    %240 = arith.addf %239, %238 : vector<1x128xf32>
    %241 = arith.divf %239, %240 : vector<1x128xf32>
    %242 = math.tanh %236 : vector<1x128xf32>
    %243 = vector.extract_strided_slice %241 {offsets = [0, 0], sizes = [1, 32], strides = [1, 1]} : vector<1x128xf32> to vector<1x32xf32>
    %244 = vector.extract_strided_slice %241 {offsets = [0, 32], sizes = [1, 32], strides = [1, 1]} : vector<1x128xf32> to vector<1x32xf32>
    %245 = vector.extract_strided_slice %241 {offsets = [0, 96], sizes = [1, 32], strides = [1, 1]} : vector<1x128xf32> to vector<1x32xf32>
    %246 = vector.extract_strided_slice %242 {offsets = [0, 64], sizes = [1, 32], strides = [1, 1]} : vector<1x128xf32> to vector<1x32xf32>
    %247 = arith.mulf %244, %230 : vector<1x32xf32>
    %248 = arith.mulf %243, %246 : vector<1x32xf32>
    %249 = arith.addf %247, %248 : vector<1x32xf32>
    %250 = math.tanh %249 : vector<1x32xf32>
    %251 = arith.mulf %245, %250 : vector<1x32xf32>
    %c3_65 = arith.constant 3 : index
    %c0_66 = arith.constant 0 : index
    %252 = vector.load %arg14[%c3_65, %c0_66] : memref<8x32xf32, #tpu.memory_space<vmem>>, vector<1x32xf32>
    tpu.vector_store %arg14[%c3_65, %c0_66], %251 {strides = array<i32>} : memref<8x32xf32, #tpu.memory_space<vmem>>, vector<1x32xf32>,
    %253 = vector.extract_strided_slice %174 {offsets = [4, 0], sizes = [1, 128], strides = [1, 1]} : vector<8x128xf32> to vector<1x128xf32>
    %cst_67 = arith.constant dense<0.000000e+00> : vector<1x128xf32>
    %254 = tpu.matmul %251, %170, %cst_67 {dimension_numbers = #tpu.dot_dimension_numbers<[1], [0], [0], [1], [0, 0, 1, 1], [], []>} : vector<1x32xf32>, vector<32x128xf32>, vector<1x128xf32> -> vector<1x128xf32>
    %255 = arith.addf %253, %254 : vector<1x128xf32>
    %256 = arith.negf %255 : vector<1x128xf32>
    %257 = math.exp %256 : vector<1x128xf32>
    %cst_68 = arith.constant 1.000000e+00 : f32
    %258 = vector.broadcast %cst_68 : f32 to vector<1x128xf32>
    %259 = arith.addf %258, %257 : vector<1x128xf32>
    %260 = arith.divf %258, %259 : vector<1x128xf32>
    %261 = math.tanh %255 : vector<1x128xf32>
    %262 = vector.extract_strided_slice %260 {offsets = [0, 0], sizes = [1, 32], strides = [1, 1]} : vector<1x128xf32> to vector<1x32xf32>
    %263 = vector.extract_strided_slice %260 {offsets = [0, 32], sizes = [1, 32], strides = [1, 1]} : vector<1x128xf32> to vector<1x32xf32>
    %264 = vector.extract_strided_slice %260 {offsets = [0, 96], sizes = [1, 32], strides = [1, 1]} : vector<1x128xf32> to vector<1x32xf32>
    %265 = vector.extract_strided_slice %261 {offsets = [0, 64], sizes = [1, 32], strides = [1, 1]} : vector<1x128xf32> to vector<1x32xf32>
    %266 = arith.mulf %263, %249 : vector<1x32xf32>
    %267 = arith.mulf %262, %265 : vector<1x32xf32>
    %268 = arith.addf %266, %267 : vector<1x32xf32>
    %269 = math.tanh %268 : vector<1x32xf32>
    %270 = arith.mulf %264, %269 : vector<1x32xf32>
    %c4_69 = arith.constant 4 : index
    %c0_70 = arith.constant 0 : index
    %271 = vector.load %arg14[%c4_69, %c0_70] : memref<8x32xf32, #tpu.memory_space<vmem>>, vector<1x32xf32>
    tpu.vector_store %arg14[%c4_69, %c0_70], %270 {strides = array<i32>} : memref<8x32xf32, #tpu.memory_space<vmem>>, vector<1x32xf32>,
    %272 = vector.extract_strided_slice %174 {offsets = [5, 0], sizes = [1, 128], strides = [1, 1]} : vector<8x128xf32> to vector<1x128xf32>
    %cst_71 = arith.constant dense<0.000000e+00> : vector<1x128xf32>
    %273 = tpu.matmul %270, %170, %cst_71 {dimension_numbers = #tpu.dot_dimension_numbers<[1], [0], [0], [1], [0, 0, 1, 1], [], []>} : vector<1x32xf32>, vector<32x128xf32>, vector<1x128xf32> -> vector<1x128xf32>
    %274 = arith.addf %272, %273 : vector<1x128xf32>
    %275 = arith.negf %274 : vector<1x128xf32>
    %276 = math.exp %275 : vector<1x128xf32>
    %cst_72 = arith.constant 1.000000e+00 : f32
    %277 = vector.broadcast %cst_72 : f32 to vector<1x128xf32>
    %278 = arith.addf %277, %276 : vector<1x128xf32>
    %279 = arith.divf %277, %278 : vector<1x128xf32>
    %280 = math.tanh %274 : vector<1x128xf32>
    %281 = vector.extract_strided_slice %279 {offsets = [0, 0], sizes = [1, 32], strides = [1, 1]} : vector<1x128xf32> to vector<1x32xf32>
    %282 = vector.extract_strided_slice %279 {offsets = [0, 32], sizes = [1, 32], strides = [1, 1]} : vector<1x128xf32> to vector<1x32xf32>
    %283 = vector.extract_strided_slice %279 {offsets = [0, 96], sizes = [1, 32], strides = [1, 1]} : vector<1x128xf32> to vector<1x32xf32>
    %284 = vector.extract_strided_slice %280 {offsets = [0, 64], sizes = [1, 32], strides = [1, 1]} : vector<1x128xf32> to vector<1x32xf32>
    %285 = arith.mulf %282, %268 : vector<1x32xf32>
    %286 = arith.mulf %281, %284 : vector<1x32xf32>
    %287 = arith.addf %285, %286 : vector<1x32xf32>
    %288 = math.tanh %287 : vector<1x32xf32>
    %289 = arith.mulf %283, %288 : vector<1x32xf32>
    %c5_73 = arith.constant 5 : index
    %c0_74 = arith.constant 0 : index
    %290 = vector.load %arg14[%c5_73, %c0_74] : memref<8x32xf32, #tpu.memory_space<vmem>>, vector<1x32xf32>
    tpu.vector_store %arg14[%c5_73, %c0_74], %289 {strides = array<i32>} : memref<8x32xf32, #tpu.memory_space<vmem>>, vector<1x32xf32>,
    %291 = vector.extract_strided_slice %174 {offsets = [6, 0], sizes = [1, 128], strides = [1, 1]} : vector<8x128xf32> to vector<1x128xf32>
    %cst_75 = arith.constant dense<0.000000e+00> : vector<1x128xf32>
    %292 = tpu.matmul %289, %170, %cst_75 {dimension_numbers = #tpu.dot_dimension_numbers<[1], [0], [0], [1], [0, 0, 1, 1], [], []>} : vector<1x32xf32>, vector<32x128xf32>, vector<1x128xf32> -> vector<1x128xf32>
    %293 = arith.addf %291, %292 : vector<1x128xf32>
    %294 = arith.negf %293 : vector<1x128xf32>
    %295 = math.exp %294 : vector<1x128xf32>
    %cst_76 = arith.constant 1.000000e+00 : f32
    %296 = vector.broadcast %cst_76 : f32 to vector<1x128xf32>
    %297 = arith.addf %296, %295 : vector<1x128xf32>
    %298 = arith.divf %296, %297 : vector<1x128xf32>
    %299 = math.tanh %293 : vector<1x128xf32>
    %300 = vector.extract_strided_slice %298 {offsets = [0, 0], sizes = [1, 32], strides = [1, 1]} : vector<1x128xf32> to vector<1x32xf32>
    %301 = vector.extract_strided_slice %298 {offsets = [0, 32], sizes = [1, 32], strides = [1, 1]} : vector<1x128xf32> to vector<1x32xf32>
    %302 = vector.extract_strided_slice %298 {offsets = [0, 96], sizes = [1, 32], strides = [1, 1]} : vector<1x128xf32> to vector<1x32xf32>
    %303 = vector.extract_strided_slice %299 {offsets = [0, 64], sizes = [1, 32], strides = [1, 1]} : vector<1x128xf32> to vector<1x32xf32>
    %304 = arith.mulf %301, %287 : vector<1x32xf32>
    %305 = arith.mulf %300, %303 : vector<1x32xf32>
    %306 = arith.addf %304, %305 : vector<1x32xf32>
    %307 = math.tanh %306 : vector<1x32xf32>
    %308 = arith.mulf %302, %307 : vector<1x32xf32>
    %c6_77 = arith.constant 6 : index
    %c0_78 = arith.constant 0 : index
    %309 = vector.load %arg14[%c6_77, %c0_78] : memref<8x32xf32, #tpu.memory_space<vmem>>, vector<1x32xf32>
    tpu.vector_store %arg14[%c6_77, %c0_78], %308 {strides = array<i32>} : memref<8x32xf32, #tpu.memory_space<vmem>>, vector<1x32xf32>,
    %310 = vector.extract_strided_slice %174 {offsets = [7, 0], sizes = [1, 128], strides = [1, 1]} : vector<8x128xf32> to vector<1x128xf32>
    %cst_79 = arith.constant dense<0.000000e+00> : vector<1x128xf32>
    %311 = tpu.matmul %308, %170, %cst_79 {dimension_numbers = #tpu.dot_dimension_numbers<[1], [0], [0], [1], [0, 0, 1, 1], [], []>} : vector<1x32xf32>, vector<32x128xf32>, vector<1x128xf32> -> vector<1x128xf32>
    %312 = arith.addf %310, %311 : vector<1x128xf32>
    %313 = arith.negf %312 : vector<1x128xf32>
    %314 = math.exp %313 : vector<1x128xf32>
    %cst_80 = arith.constant 1.000000e+00 : f32
    %315 = vector.broadcast %cst_80 : f32 to vector<1x128xf32>
    %316 = arith.addf %315, %314 : vector<1x128xf32>
    %317 = arith.divf %315, %316 : vector<1x128xf32>
    %318 = math.tanh %312 : vector<1x128xf32>
    %319 = vector.extract_strided_slice %317 {offsets = [0, 0], sizes = [1, 32], strides = [1, 1]} : vector<1x128xf32> to vector<1x32xf32>
    %320 = vector.extract_strided_slice %317 {offsets = [0, 32], sizes = [1, 32], strides = [1, 1]} : vector<1x128xf32> to vector<1x32xf32>
    %321 = vector.extract_strided_slice %317 {offsets = [0, 96], sizes = [1, 32], strides = [1, 1]} : vector<1x128xf32> to vector<1x32xf32>
    %322 = vector.extract_strided_slice %318 {offsets = [0, 64], sizes = [1, 32], strides = [1, 1]} : vector<1x128xf32> to vector<1x32xf32>
    %323 = arith.mulf %320, %306 : vector<1x32xf32>
    %324 = arith.mulf %319, %322 : vector<1x32xf32>
    %325 = arith.addf %323, %324 : vector<1x32xf32>
    %326 = math.tanh %325 : vector<1x32xf32>
    %327 = arith.mulf %321, %326 : vector<1x32xf32>
    %c7_81 = arith.constant 7 : index
    %c0_82 = arith.constant 0 : index
    %328 = vector.load %arg14[%c7_81, %c0_82] : memref<8x32xf32, #tpu.memory_space<vmem>>, vector<1x32xf32>
    tpu.vector_store %arg14[%c7_81, %c0_82], %327 {strides = array<i32>} : memref<8x32xf32, #tpu.memory_space<vmem>>, vector<1x32xf32>,
    %c0_83 = arith.constant 0 : index
    %c0_84 = arith.constant 0 : index
    %329 = vector.load %arg14[%c0_83, %c0_84] : memref<8x32xf32, #tpu.memory_space<vmem>>, vector<8x32xf32>
    %cst_85 = arith.constant dense<0.000000e+00> : vector<32xf32>
    %330 = vector.multi_reduction <add>, %329, %cst_85 [0] : vector<8x32xf32> to vector<32xf32>
    %331 = vector.shape_cast %330 : vector<32xf32> to vector<1x32xf32>
    %cst_86 = arith.constant 8.000000e+00 : f32
    %332 = vector.broadcast %cst_86 : f32 to vector<1x32xf32>
    %333 = arith.divf %331, %332 : vector<1x32xf32>
    %334 = vector.broadcast %333 : vector<1x32xf32> to vector<8x32xf32>
    %335 = arith.subf %329, %334 : vector<8x32xf32>
    %336 = arith.mulf %335, %335 : vector<8x32xf32>
    %cst_87 = arith.constant dense<0.000000e+00> : vector<32xf32>
    %337 = vector.multi_reduction <add>, %336, %cst_87 [0] : vector<8x32xf32> to vector<32xf32>
    %338 = vector.shape_cast %337 : vector<32xf32> to vector<1x32xf32>
    %cst_88 = arith.constant 8.000000e+00 : f32
    %339 = vector.broadcast %cst_88 : f32 to vector<1x32xf32>
    %340 = arith.divf %338, %339 : vector<1x32xf32>
    %c0_89 = arith.constant 0 : index
    %c0_90 = arith.constant 0 : index
    %341 = vector.load %arg9[%c0_89, %c0_90] : memref<1x32xf32, #tpu.memory_space<vmem>>, vector<1x32xf32>
    %cst_91 = arith.constant 9.99999974E-6 : f32
    %342 = vector.broadcast %cst_91 : f32 to vector<1x32xf32>
    %343 = arith.addf %340, %342 : vector<1x32xf32>
    %344 = math.rsqrt %343 : vector<1x32xf32>
    %345 = arith.mulf %341, %344 : vector<1x32xf32>
    %c0_92 = arith.constant 0 : index
    %c0_93 = arith.constant 0 : index
    %346 = vector.load %arg10[%c0_92, %c0_93] : memref<1x32xf32, #tpu.memory_space<vmem>>, vector<1x32xf32>
    %347 = arith.mulf %333, %345 : vector<1x32xf32>
    %348 = arith.subf %346, %347 : vector<1x32xf32>
    %349 = vector.broadcast %345 : vector<1x32xf32> to vector<8x32xf32>
    %350 = arith.mulf %329, %349 : vector<8x32xf32>
    %351 = vector.broadcast %348 : vector<1x32xf32> to vector<8x32xf32>
    %352 = arith.addf %350, %351 : vector<8x32xf32>
    %cst_94 = arith.constant 0.000000e+00 : f32
    %353 = vector.broadcast %cst_94 : f32 to vector<8x32xf32>
    %354 = arith.maximumf %352, %353 : vector<8x32xf32>
    %c0_95 = arith.constant 0 : index
    %c0_96 = arith.constant 0 : index
    %355 = vector.load %arg11[%c0_95, %c0_96] : memref<32x4xf32, #tpu.memory_space<vmem>>, vector<32x4xf32>
    %cst_97 = arith.constant dense<0.000000e+00> : vector<8x4xf32>
    %356 = tpu.matmul %354, %355, %cst_97 {dimension_numbers = #tpu.dot_dimension_numbers<[1], [0], [0], [1], [0, 0, 1, 1], [], []>} : vector<8x32xf32>, vector<32x4xf32>, vector<8x4xf32> -> vector<8x4xf32>
    %c0_98 = arith.constant 0 : index
    %c0_99 = arith.constant 0 : index
    %357 = vector.load %arg12[%c0_98, %c0_99] : memref<1x4xf32, #tpu.memory_space<vmem>>, vector<1x4xf32>
    %358 = vector.broadcast %357 : vector<1x4xf32> to vector<8x4xf32>
    %359 = arith.addf %356, %358 : vector<8x4xf32>
    %360 = arith.negf %359 : vector<8x4xf32>
    %361 = math.exp %360 : vector<8x4xf32>
    %cst_100 = arith.constant 1.000000e+00 : f32
    %362 = vector.broadcast %cst_100 : f32 to vector<8x4xf32>
    %363 = arith.addf %362, %361 : vector<8x4xf32>
    %364 = arith.divf %362, %363 : vector<8x4xf32>
    %c0_101 = arith.constant 0 : index
    %c0_102 = arith.constant 0 : index
    %365 = vector.load %arg13[%c0_101, %c0_102] : memref<8x4xf32, #tpu.memory_space<vmem>>, vector<8x4xf32>
    tpu.vector_store %arg13[%c0_101, %c0_102], %364 {strides = array<i32>} : memref<8x4xf32, #tpu.memory_space<vmem>>, vector<8x4xf32>,
    return
  }
}

</mosaic_0001>

<llo_original>
// kernel: tpu_custom_call.1
$region0: #{tpu_custom_call.1}
  #allocation0 [shape = 'u32[]', space=smem, size = 0x4, offset = 0x4, fixed_abs, tag = 'smem constant byte address 0x4 - core index']
  #allocation1 [shape = 'u32[144,128]{1,0:T(1,128)}', space=vmem, size = 0x12000, scoped, tag = 'internal scratch']
  #allocation2 [shape = 'f32[8,32]{1,0:T(8,128)}', space=vmem, size = 0x1000, scoped, tag = 'scratch operand']
  %s0 = inlined_call_operand.hbm [shape: f32[8,12], index: 0, kind: input, shape index: {}]
  %s1 = inlined_call_operand.vmem [shape: f32[12,16], index: 1, kind: input, shape index: {}]
  %s2 = inlined_call_operand.vmem [shape: f32[1,16], index: 2, kind: input, shape index: {}]
  %s3 = inlined_call_operand.hbm [shape: f32[16,128], index: 3, kind: input, shape index: {}]
  %s4 = inlined_call_operand.vmem [shape: f32[32,128], index: 4, kind: input, shape index: {}]
  %s5 = inlined_call_operand.vmem [shape: f32[1,128], index: 5, kind: input, shape index: {}]
  %s6 = inlined_call_operand.hbm [shape: f32[32,128], index: 6, kind: input, shape index: {}]
  %s7 = inlined_call_operand.hbm [shape: f32[32,128], index: 7, kind: input, shape index: {}]
  %s8 = inlined_call_operand.vmem [shape: f32[1,128], index: 8, kind: input, shape index: {}]
  %s9 = inlined_call_operand.vmem [shape: f32[1,32], index: 9, kind: input, shape index: {}]
  %s10 = inlined_call_operand.vmem [shape: f32[1,32], index: 10, kind: input, shape index: {}]
  %s11 = inlined_call_operand.vmem [shape: f32[32,4], index: 11, kind: input, shape index: {}]
  %s12 = inlined_call_operand.vmem [shape: f32[1,4], index: 12, kind: input, shape index: {}]
  %s13 = inlined_call_operand.vmem [shape: f32[8,4], index: 13, kind: output, shape index: {}]
  %s14 = sld [smem:[#allocation0]]
  $region78: #{tpu_custom_call.1} parent=0
    _
  %s16 = ssub.s32 1, %s14
  %s17 = scalar_select 0, %s16, %s14
  $region1: #{tpu_custom_call.1} parent=0
    #allocation3 [shape = 'u8[4096]{0}', space=vmem, size = 0x1000, scoped, tag = 'input window, operand 0, single buffered']
    #allocation4 [shape = 's32[1]{0}', space=sflag, size = 0x4, scoped, tag = 'scoped memory for tpu_custom_call.1']
    #allocation5 [shape = 'u8[8192]{0}', space=vmem, size = 0x2000, scoped, tag = 'input window, operand 3, single buffered']
    #allocation6 [shape = 's32[1]{0}', space=sflag, size = 0x4, scoped, tag = 'scoped memory for tpu_custom_call.1']
    #allocation7 [shape = 'u8[16384]{0}', space=vmem, size = 0x4000, scoped, tag = 'input window, operand 6, single buffered']
    #allocation8 [shape = 'u8[16384]{0}', space=vmem, size = 0x4000, scoped, tag = 'input window, operand 7, single buffered']
    #allocation9 [shape = 's32[1]{0}', space=sflag, size = 0x4, scoped, tag = 'scoped memory for tpu_custom_call.1']
    %18 = vsyncpa [#allocation4], 0
    %19 = vsyncpa [#allocation6], 0
    %20 = vsyncpa [#allocation9], 0
    // Predicated region
    $region2: #{tpu_custom_call.1} parent=1 // pred_check
      _
    $region3: #{tpu_custom_call.1} parent=1 // pred_check_branch
      %22 = sbr.rel (0) target = $region5
    $region4: #{tpu_custom_call.1} parent=1 // pred_region
      %s24 = ssub.s32 128, 128
      %25 = vsyncadd [#allocation4], %s24
      %s27 = sshll.u32 [#allocation3], 4
      %s28 = int_to_ptr.vmem [resolvable:$true] %s27
      %30 = dma.hbm_to_vmem [thread:$0]  %s0, 128, %s28, [#allocation4]
    $region5: #{tpu_custom_call.1} parent=1 // pred_fallthru
      _
    // Predicated region
    $region6: #{tpu_custom_call.1} parent=1 // pred_check
      _
    $region7: #{tpu_custom_call.1} parent=1 // pred_check_branch
      %32 = sbr.rel (0) target = $region9
    $region8: #{tpu_custom_call.1} parent=1 // pred_region
      _
    $region9: #{tpu_custom_call.1} parent=1 // pred_fallthru
      _
    // Predicated region
    $region10: #{tpu_custom_call.1} parent=1 // pred_check
      _
    $region11: #{tpu_custom_call.1} parent=1 // pred_check_branch
      %34 = sbr.rel (0) target = $region13
    $region12: #{tpu_custom_call.1} parent=1 // pred_region
      _
    $region13: #{tpu_custom_call.1} parent=1 // pred_fallthru
      _
    // Predicated region
    $region14: #{tpu_custom_call.1} parent=1 // pred_check
      _
    $region15: #{tpu_custom_call.1} parent=1 // pred_check_branch
      %36 = sbr.rel (0) target = $region17
    $region16: #{tpu_custom_call.1} parent=1 // pred_region
      %s38 = ssub.s32 256, 256
      %39 = vsyncadd [#allocation6], %s38
      %s40 = sshll.u32 [#allocation5], 4
      %s41 = int_to_ptr.vmem [resolvable:$true] %s40
      %46 = dma.hbm_to_vmem [thread:$0]  %s3, 256, %s41, [#allocation6], 128, 128, 8
    $region17: #{tpu_custom_call.1} parent=1 // pred_fallthru
      _
    // Predicated region
    $region18: #{tpu_custom_call.1} parent=1 // pred_check
      _
    $region19: #{tpu_custom_call.1} parent=1 // pred_check_branch
      %48 = sbr.rel (0) target = $region21
    $region20: #{tpu_custom_call.1} parent=1 // pred_region
      _
    $region21: #{tpu_custom_call.1} parent=1 // pred_fallthru
      _
    // Predicated region
    $region22: #{tpu_custom_call.1} parent=1 // pred_check
      _
    $region23: #{tpu_custom_call.1} parent=1 // pred_check_branch
      %50 = sbr.rel (0) target = $region25
    $region24: #{tpu_custom_call.1} parent=1 // pred_region
      _
    $region25: #{tpu_custom_call.1} parent=1 // pred_fallthru
      _
    // Predicated region
    $region26: #{tpu_custom_call.1} parent=1 // pred_check
      _
    $region27: #{tpu_custom_call.1} parent=1 // pred_check_branch
      %52 = sbr.rel (0) target = $region29
    $region28: #{tpu_custom_call.1} parent=1 // pred_region
      %s54 = ssub.s32 512, 512
      %55 = vsyncadd [#allocation6], %s54
      %s56 = sshll.u32 [#allocation7], 4
      %s57 = int_to_ptr.vmem [resolvable:$true] %s56
      %62 = dma.hbm_to_vmem [thread:$0]  %s6, 512, %s57, [#allocation6], 128, 128, 8
    $region29: #{tpu_custom_call.1} parent=1 // pred_fallthru
      _
    // Predicated region
    $region30: #{tpu_custom_call.1} parent=1 // pred_check
      _
    $region31: #{tpu_custom_call.1} parent=1 // pred_check_branch
      %64 = sbr.rel (0) target = $region33
    $region32: #{tpu_custom_call.1} parent=1 // pred_region
      %s66 = ssub.s32 512, 512
      %67 = vsyncadd [#allocation9], %s66
      %s68 = sshll.u32 [#allocation8], 4
      %s69 = int_to_ptr.vmem [resolvable:$true] %s68
      %74 = dma.hbm_to_vmem [thread:$0]  %s7, 512, %s69, [#allocation9], 128, 128, 8
    $region33: #{tpu_custom_call.1} parent=1 // pred_fallthru
      _
    // Predicated region
    $region34: #{tpu_custom_call.1} parent=1 // pred_check
      _
    $region35: #{tpu_custom_call.1} parent=1 // pred_check_branch
      %76 = sbr.rel (0) target = $region37
    $region36: #{tpu_custom_call.1} parent=1 // pred_region
      _
    $region37: #{tpu_custom_call.1} parent=1 // pred_fallthru
      _
    // Predicated region
    $region38: #{tpu_custom_call.1} parent=1 // pred_check
      _
    $region39: #{tpu_custom_call.1} parent=1 // pred_check_branch
      %78 = sbr.rel (0) target = $region41
    $region40: #{tpu_custom_call.1} parent=1 // pred_region
      _
    $region41: #{tpu_custom_call.1} parent=1 // pred_fallthru
      _
    // Predicated region
    $region42: #{tpu_custom_call.1} parent=1 // pred_check
      _
    $region43: #{tpu_custom_call.1} parent=1 // pred_check_branch
      %80 = sbr.rel (0) target = $region45
    $region44: #{tpu_custom_call.1} parent=1 // pred_region
      _
    $region45: #{tpu_custom_call.1} parent=1 // pred_fallthru
      _
    // Predicated region
    $region46: #{tpu_custom_call.1} parent=1 // pred_check
      _
    $region47: #{tpu_custom_call.1} parent=1 // pred_check_branch
      %82 = sbr.rel (0) target = $region49
    $region48: #{tpu_custom_call.1} parent=1 // pred_region
      _
    $region49: #{tpu_custom_call.1} parent=1 // pred_fallthru
      _
    // Predicated region
    $region50: #{tpu_custom_call.1} parent=1 // pred_check
      _
    $region51: #{tpu_custom_call.1} parent=1 // pred_check_branch
      %84 = sbr.rel (0) target = $region53
    $region52: #{tpu_custom_call.1} parent=1 // pred_region
      _
    $region53: #{tpu_custom_call.1} parent=1 // pred_fallthru
      _
    // Predicated region
    $region54: #{tpu_custom_call.1} parent=1 // pred_check
      _
    $region55: #{tpu_custom_call.1} parent=1 // pred_check_branch
      %86 = sbr.rel (0) target = $region57
    $region56: #{tpu_custom_call.1} parent=1 // pred_region
      %87 = dma.done [#allocation4], 128
    $region57: #{tpu_custom_call.1} parent=1 // pred_fallthru
      _
    // Predicated region
    $region58: #{tpu_custom_call.1} parent=1 // pred_check
      _
    $region59: #{tpu_custom_call.1} parent=1 // pred_check_branch
      %89 = sbr.rel (0) target = $region61
    $region60: #{tpu_custom_call.1} parent=1 // pred_region
      %90 = dma.done [#allocation6], 256
    $region61: #{tpu_custom_call.1} parent=1 // pred_fallthru
      _
    // Predicated region
    $region62: #{tpu_custom_call.1} parent=1 // pred_check
      _
    $region63: #{tpu_custom_call.1} parent=1 // pred_check_branch
      %92 = sbr.rel (0) target = $region65
    $region64: #{tpu_custom_call.1} parent=1 // pred_region
      %93 = dma.done [#allocation6], 512
    $region65: #{tpu_custom_call.1} parent=1 // pred_fallthru
      _
    // Predicated region
    $region66: #{tpu_custom_call.1} parent=1 // pred_check
      _
    $region67: #{tpu_custom_call.1} parent=1 // pred_check_branch
      %95 = sbr.rel (0) target = $region69
    $region68: #{tpu_custom_call.1} parent=1 // pred_region
      %96 = dma.done [#allocation9], 512
    $region69: #{tpu_custom_call.1} parent=1 // pred_fallthru
      _
    %v97 = vld [vmem:[#allocation3] sm:$0xff]
    %v98 = vld [vmem:[%s1] sm:$0xff]
    %v99 = vld [vmem:[%s1 + $0x8] sm:$0xf]
    %v100 = vld [vmem:[%s2] sm:$0x1]
    %v102 = vlaneseq
    %v103 = vshrl.u32 %v102, 7
    %v104 = vsub.s32 0, %v103
    %v105 = vrot.slane %v100, %v104
    %vm107 = vcmask 97280
    %v109 = vsel %vm107, %v97, 0
    %vm111 = vcmask 1043456
    %v113 = vsel %vm111, %v99, 0
    %115 = vmatprep.subr.mxu0 0.0
    %116 = vmatpush1.msra.mxu0 %v98
    %117 = vmatprep.subr.mxu0 0.0
    %118 = vmatpush1.msra.mxu0 %v113
    %119 = vmatprep.subr.mxu0 0.0
    %120 = vmatpush1.msra.mxu0 0.0
    %121 = vmatprep.subr.mxu0 0.0
    %122 = vmatpush1.msra.mxu0 0.0
    %123 = vmatprep.subr.mxu0 0.0
    %124 = vmatpush1.msra.mxu0 0.0
    %125 = vmatprep.subr.mxu0 0.0
    %126 = vmatpush1.msra.mxu0 0.0
    %127 = vmatprep.subr.mxu0 0.0
    %128 = vmatpush1.msra.mxu0 0.0
    %129 = vmatprep.subr.mxu0 0.0
    %130 = vmatpush1.msra.mxu0 0.0
    %131 = vmatprep.subr.mxu0 0.0
    %132 = vmatpush1.msra.mxu0 0.0
    %133 = vmatprep.subr.mxu0 0.0
    %134 = vmatpush1.msra.mxu0 0.0
    %135 = vmatprep.subr.mxu0 0.0
    %136 = vmatpush1.msra.mxu0 0.0
    %137 = vmatprep.subr.mxu0 0.0
    %138 = vmatpush1.msra.mxu0 0.0
    %139 = vmatprep.subr.mxu0 0.0
    %140 = vmatpush1.msra.mxu0 0.0
    %141 = vmatprep.subr.mxu0 0.0
    %142 = vmatpush1.msra.mxu0 0.0
    %143 = vmatprep.subr.mxu0 0.0
    %144 = vmatpush1.msra.mxu0 0.0
    %145 = vmatprep.subr.mxu0 0.0
    %146 = vmatpush1.msra.mxu0 0.0
    %147 = vmatprep.subr.mxu0 0.0
    %148 = vmatpush1.msra.mxu0 0.0
    %149 = vmatprep.subr.mxu0 0.0
    %150 = vmatpush1.msra.mxu0 0.0
    %151 = vmatprep.subr.mxu0 0.0
    %152 = vmatpush1.msra.mxu0 0.0
    %153 = vmatprep.subr.mxu0 0.0
    %154 = vmatpush1.msra.mxu0 0.0
    %155 = vmatprep.subr.mxu0 0.0
    %156 = vmatpush1.msra.mxu0 0.0
    %157 = vmatprep.subr.mxu0 0.0
    %158 = vmatpush1.msra.mxu0 0.0
    %159 = vmatprep.subr.mxu0 0.0
    %160 = vmatpush1.msra.mxu0 0.0
    %161 = vmatprep.subr.mxu0 0.0
    %162 = vmatpush1.msra.mxu0 0.0
    %163 = vmatprep.subr.mxu0 0.0
    %164 = vmatpush1.msra.mxu0 0.0
    %165 = vmatprep.subr.mxu0 0.0
    %166 = vmatpush1.msra.mxu0 0.0
    %167 = vmatprep.subr.mxu0 0.0
    %168 = vmatpush1.msra.mxu0 0.0
    %169 = vmatprep.subr.mxu0 0.0
    %170 = vmatpush1.msra.mxu0 0.0
    %171 = vmatprep.subr.mxu0 0.0
    %172 = vmatpush1.msra.mxu0 0.0
    %173 = vmatprep.subr.mxu0 0.0
    %174 = vmatpush1.msra.mxu0 0.0
    %175 = vmatprep.subr.mxu0 0.0
    %176 = vmatpush1.msra.mxu0 0.0
    %177 = vmatprep.subr.mxu0 0.0
    %178 = vmatpush1.msra.mxu0 0.0
    %179 = vmatprep.mubr.f32.mxu0 0.0
    %180 = vmatmul.mubr.f32.gmra.mrb[0].mxu0 %v109
    %v181 = vpop.f32.mrb[0].mxu0
    %v182 = vadd.f32 %v105, %v181
    %v183 = vpop.f32.mrb[0].mxu0
    %184 = vdwg.mxu0
    %v185 = vmax.f32 %v182, 0.0
    %v186 = vld [vmem:[#allocation5] sm:$0xff]
    %v187 = vld [vmem:[#allocation5 + $0x8] sm:$0xff]
    %v188 = vld [vmem:[%s4] sm:$0xff]
    %v189 = vld [vmem:[%s4 + $0x8] sm:$0xff]
    %v190 = vld [vmem:[%s4 + $0x10] sm:$0xff]
    %v191 = vld [vmem:[%s4 + $0x18] sm:$0xff]
    %v192 = vld [vmem:[%s5] sm:$0x1]
    %v194 = vlaneseq
    %v195 = vshrl.u32 %v194, 7
    %v196 = vsub.s32 0, %v195
    %v197 = vrot.slane %v192, %v196
    %vm199 = vcmask 130048
    %v201 = vsel %vm199, %v185, 0
    %203 = vmatprep.subr.mxu0 0.0
    %204 = vmatpush1.msra.mxu0 %v186
    %205 = vmatprep.subr.mxu0 0.0
    %206 = vmatpush1.msra.mxu0 %v187
    %207 = vmatprep.subr.mxu0 0.0
    %208 = vmatpush1.msra.mxu0 0.0
    %209 = vmatprep.subr.mxu0 0.0
    %210 = vmatpush1.msra.mxu0 0.0
    %211 = vmatprep.subr.mxu0 0.0
    %212 = vmatpush1.msra.mxu0 0.0
    %213 = vmatprep.subr.mxu0 0.0
    %214 = vmatpush1.msra.mxu0 0.0
    %215 = vmatprep.subr.mxu0 0.0
    %216 = vmatpush1.msra.mxu0 0.0
    %217 = vmatprep.subr.mxu0 0.0
    %218 = vmatpush1.msra.mxu0 0.0
    %219 = vmatprep.subr.mxu0 0.0
    %220 = vmatpush1.msra.mxu0 0.0
    %221 = vmatprep.subr.mxu0 0.0
    %222 = vmatpush1.msra.mxu0 0.0
    %223 = vmatprep.subr.mxu0 0.0
    %224 = vmatpush1.msra.mxu0 0.0
    %225 = vmatprep.subr.mxu0 0.0
    %226 = vmatpush1.msra.mxu0 0.0
    %227 = vmatprep.subr.mxu0 0.0
    %228 = vmatpush1.msra.mxu0 0.0
    %229 = vmatprep.subr.mxu0 0.0
    %230 = vmatpush1.msra.mxu0 0.0
    %231 = vmatprep.subr.mxu0 0.0
    %232 = vmatpush1.msra.mxu0 0.0
    %233 = vmatprep.subr.mxu0 0.0
    %234 = vmatpush1.msra.mxu0 0.0
    %235 = vmatprep.subr.mxu0 0.0
    %236 = vmatpush1.msra.mxu0 0.0
    %237 = vmatprep.subr.mxu0 0.0
    %238 = vmatpush1.msra.mxu0 0.0
    %239 = vmatprep.subr.mxu0 0.0
    %240 = vmatpush1.msra.mxu0 0.0
    %241 = vmatprep.subr.mxu0 0.0
    %242 = vmatpush1.msra.mxu0 0.0
    %243 = vmatprep.subr.mxu0 0.0
    %244 = vmatpush1.msra.mxu0 0.0
    %245 = vmatprep.subr.mxu0 0.0
    %246 = vmatpush1.msra.mxu0 0.0
    %247 = vmatprep.subr.mxu0 0.0
    %248 = vmatpush1.msra.mxu0 0.0
    %249 = vmatprep.subr.mxu0 0.0
    %250 = vmatpush1.msra.mxu0 0.0
    %251 = vmatprep.subr.mxu0 0.0
    %252 = vmatpush1.msra.mxu0 0.0
    %253 = vmatprep.subr.mxu0 0.0
    %254 = vmatpush1.msra.mxu0 0.0
    %255 = vmatprep.subr.mxu0 0.0
    %256 = vmatpush1.msra.mxu0 0.0
    %257 = vmatprep.subr.mxu0 0.0
    %258 = vmatpush1.msra.mxu0 0.0
    %259 = vmatprep.subr.mxu0 0.0
    %260 = vmatpush1.msra.mxu0 0.0
    %261 = vmatprep.subr.mxu0 0.0
    %262 = vmatpush1.msra.mxu0 0.0
    %263 = vmatprep.subr.mxu0 0.0
    %264 = vmatpush1.msra.mxu0 0.0
    %265 = vmatprep.subr.mxu0 0.0
    %266 = vmatpush1.msra.mxu0 0.0
    %267 = vmatprep.mubr.f32.mxu0 0.0
    %268 = vmatmul.mubr.f32.gmra.mrb[0].mxu0 %v201
    %v269 = vpop.f32.mrb[0].mxu0
    %v270 = vadd.f32 %v197, %v269
    %v271 = vpop.f32.mrb[0].mxu0
    %272 = vdwg.mxu0
    %vm273 = vcmask 261120
    %v275 = vsel %vm273, 0.0, 0
    %277 = vmatprep.subr.mxu0 0.0
    %278 = vmatpush1.msra.mxu0 %v188
    %279 = vmatprep.subr.mxu0 0.0
    %280 = vmatpush1.msra.mxu0 %v189
    %281 = vmatprep.subr.mxu0 0.0
    %282 = vmatpush1.msra.mxu0 %v190
    %283 = vmatprep.subr.mxu0 0.0
    %284 = vmatpush1.msra.mxu0 %v191
    %285 = vmatprep.subr.mxu0 0.0
    %286 = vmatpush1.msra.mxu0 0.0
    %287 = vmatprep.subr.mxu0 0.0
    %288 = vmatpush1.msra.mxu0 0.0
    %289 = vmatprep.subr.mxu0 0.0
    %290 = vmatpush1.msra.mxu0 0.0
    %291 = vmatprep.subr.mxu0 0.0
    %292 = vmatpush1.msra.mxu0 0.0
    %293 = vmatprep.subr.mxu0 0.0
    %294 = vmatpush1.msra.mxu0 0.0
    %295 = vmatprep.subr.mxu0 0.0
    %296 = vmatpush1.msra.mxu0 0.0
    %297 = vmatprep.subr.mxu0 0.0
    %298 = vmatpush1.msra.mxu0 0.0
    %299 = vmatprep.subr.mxu0 0.0
    %300 = vmatpush1.msra.mxu0 0.0
    %301 = vmatprep.subr.mxu0 0.0
    %302 = vmatpush1.msra.mxu0 0.0
    %303 = vmatprep.subr.mxu0 0.0
    %304 = vmatpush1.msra.mxu0 0.0
    %305 = vmatprep.subr.mxu0 0.0
    %306 = vmatpush1.msra.mxu0 0.0
    %307 = vmatprep.subr.mxu0 0.0
    %308 = vmatpush1.msra.mxu0 0.0
    %309 = vmatprep.subr.mxu0 0.0
    %310 = vmatpush1.msra.mxu0 0.0
    %311 = vmatprep.subr.mxu0 0.0
    %312 = vmatpush1.msra.mxu0 0.0
    %313 = vmatprep.subr.mxu0 0.0
    %314 = vmatpush1.msra.mxu0 0.0
    %315 = vmatprep.subr.mxu0 0.0
    %316 = vmatpush1.msra.mxu0 0.0
    %317 = vmatprep.subr.mxu0 0.0
    %318 = vmatpush1.msra.mxu0 0.0
    %319 = vmatprep.subr.mxu0 0.0
    %320 = vmatpush1.msra.mxu0 0.0
    %321 = vmatprep.subr.mxu0 0.0
    %322 = vmatpush1.msra.mxu0 0.0
    %323 = vmatprep.subr.mxu0 0.0
    %324 = vmatpush1.msra.mxu0 0.0
    %325 = vmatprep.subr.mxu0 0.0
    %326 = vmatpush1.msra.mxu0 0.0
    %327 = vmatprep.subr.mxu0 0.0
    %328 = vmatpush1.msra.mxu0 0.0
    %329 = vmatprep.subr.mxu0 0.0
    %330 = vmatpush1.msra.mxu0 0.0
    %331 = vmatprep.subr.mxu0 0.0
    %332 = vmatpush1.msra.mxu0 0.0
    %333 = vmatprep.subr.mxu0 0.0
    %334 = vmatpush1.msra.mxu0 0.0
    %335 = vmatprep.subr.mxu0 0.0
    %336 = vmatpush1.msra.mxu0 0.0
    %337 = vmatprep.subr.mxu0 0.0
    %338 = vmatpush1.msra.mxu0 0.0
    %339 = vmatprep.subr.mxu0 0.0
    %340 = vmatpush1.msra.mxu0 0.0
    %341 = vmatprep.mubr.f32.mxu0 0.0
    %342 = vmatmul.mubr.f32.gmra.mrb[0].mxu0 %v275
    %v343 = vpop.f32.mrb[0].mxu0
    %v344 = vadd.f32 0.0, %v343
    %v345 = vpop.f32.mrb[0].mxu0
    %346 = vdwg.mxu0
    %v347 = vadd.f32 %v270, %v344
    %v348 = vxor.u32 %v347, 2147483648
    %v349 = vmul.f32 %v348, 1.442695
    %v350 = vpow.pop %v349
    %v351 = vadd.f32 %v350, 1.0
    %v352 = vrcp.pop %v351
    %v353 = vmul.f32 1.0, %v352
    %v354 = vtanh.pop %v347
    %v355 = vmul.f32 %v353, 0.0
    %357 = vrot.lane.b32.xlu0 %v354, 64
    %v358 = vpop.permute.xlu0 %357
    %v360 = vmul.f32 %v353, %v358
    %362 = vrot.lane.b32.xlu0 %v360, 32
    %v363 = vpop.permute.xlu0 %362
    %v365 = vadd.f32 %v355, %v363
    %v366 = vtanh.pop %v365
    %368 = vrot.lane.b32.xlu0 %v366, 64
    %v369 = vpop.permute.xlu0 %368
    %v371 = vmul.f32 %v353, %v369
    %373 = vrot.lane.b32.xlu0 %v371, 32
    %v374 = vpop.permute.xlu0 %373
    %vm376 = vcmask 253952
    %377 = vst.msk [vmem:[#allocation2] sm:$0x1] %vm376, %v374
    %v378 = vsel %vm273, %v374, 0
    %380 = vmatprep.subr.mxu0 0.0
    %381 = vmatpush1.msra.mxu0 %v188
    %382 = vmatprep.subr.mxu0 0.0
    %383 = vmatpush1.msra.mxu0 %v189
    %384 = vmatprep.subr.mxu0 0.0
    %385 = vmatpush1.msra.mxu0 %v190
    %386 = vmatprep.subr.mxu0 0.0
    %387 = vmatpush1.msra.mxu0 %v191
    %388 = vmatprep.subr.mxu0 0.0
    %389 = vmatpush1.msra.mxu0 0.0
    %390 = vmatprep.subr.mxu0 0.0
    %391 = vmatpush1.msra.mxu0 0.0
    %392 = vmatprep.subr.mxu0 0.0
    %393 = vmatpush1.msra.mxu0 0.0
    %394 = vmatprep.subr.mxu0 0.0
    %395 = vmatpush1.msra.mxu0 0.0
    %396 = vmatprep.subr.mxu0 0.0
    %397 = vmatpush1.msra.mxu0 0.0
    %398 = vmatprep.subr.mxu0 0.0
    %399 = vmatpush1.msra.mxu0 0.0
    %400 = vmatprep.subr.mxu0 0.0
    %401 = vmatpush1.msra.mxu0 0.0
    %402 = vmatprep.subr.mxu0 0.0
    %403 = vmatpush1.msra.mxu0 0.0
    %404 = vmatprep.subr.mxu0 0.0
    %405 = vmatpush1.msra.mxu0 0.0
    %406 = vmatprep.subr.mxu0 0.0
    %407 = vmatpush1.msra.mxu0 0.0
    %408 = vmatprep.subr.mxu0 0.0
    %409 = vmatpush1.msra.mxu0 0.0
    %410 = vmatprep.subr.mxu0 0.0
    %411 = vmatpush1.msra.mxu0 0.0
    %412 = vmatprep.subr.mxu0 0.0
    %413 = vmatpush1.msra.mxu0 0.0
    %414 = vmatprep.subr.mxu0 0.0
    %415 = vmatpush1.msra.mxu0 0.0
    %416 = vmatprep.subr.mxu0 0.0
    %417 = vmatpush1.msra.mxu0 0.0
    %418 = vmatprep.subr.mxu0 0.0
    %419 = vmatpush1.msra.mxu0 0.0
    %420 = vmatprep.subr.mxu0 0.0
    %421 = vmatpush1.msra.mxu0 0.0
    %422 = vmatprep.subr.mxu0 0.0
    %423 = vmatpush1.msra.mxu0 0.0
    %424 = vmatprep.subr.mxu0 0.0
    %425 = vmatpush1.msra.mxu0 0.0
    %426 = vmatprep.subr.mxu0 0.0
    %427 = vmatpush1.msra.mxu0 0.0
    %428 = vmatprep.subr.mxu0 0.0
    %429 = vmatpush1.msra.mxu0 0.0
    %430 = vmatprep.subr.mxu0 0.0
    %431 = vmatpush1.msra.mxu0 0.0
    %432 = vmatprep.subr.mxu0 0.0
    %433 = vmatpush1.msra.mxu0 0.0
    %434 = vmatprep.subr.mxu0 0.0
    %435 = vmatpush1.msra.mxu0 0.0
    %436 = vmatprep.subr.mxu0 0.0
    %437 = vmatpush1.msra.mxu0 0.0
    %438 = vmatprep.subr.mxu0 0.0
    %439 = vmatpush1.msra.mxu0 0.0
    %440 = vmatprep.subr.mxu0 0.0
    %441 = vmatpush1.msra.mxu0 0.0
    %442 = vmatprep.subr.mxu0 0.0
    %443 = vmatpush1.msra.mxu0 0.0
    %444 = vmatprep.mubr.f32.mxu0 0.0
    %445 = vmatmul.mubr.f32.gmra.mrb[0].mxu0 %v378
    %v446 = vpop.f32.mrb[0].mxu0
    %v447 = vadd.f32 0.0, %v446
    %v448 = vpop.f32.mrb[0].mxu0
    %449 = vdwg.mxu0
    %v451 = vrot.slane %v447, 7
    %v453 = vadd.f32 %v270, %v451
    %v454 = vxor.u32 %v453, 2147483648
    %v455 = vmul.f32 %v454, 1.442695
    %v456 = vpow.pop %v455
    %v457 = vadd.f32 %v456, 1.0
    %v458 = vrcp.pop %v457
    %v459 = vmul.f32 1.0, %v458
    %v460 = vtanh.pop %v453
    %v462 = vrot.slane %v365, 7
    %v464 = vmul.f32 %v459, %v462
    %466 = vrot.lane.b32.xlu0 %v460, 64
    %v467 = vpop.permute.xlu0 %466
    %v469 = vmul.f32 %v459, %v467
    %471 = vrot.lane.b32.xlu0 %v469, 32
    %v472 = vpop.permute.xlu0 %471
    %v474 = vadd.f32 %v464, %v472
    %v475 = vtanh.pop %v474
    %477 = vrot.lane.b32.xlu0 %v475, 64
    %v478 = vpop.permute.xlu0 %477
    %v480 = vmul.f32 %v459, %v478
    %482 = vrot.lane.b32.xlu0 %v480, 32
    %v483 = vpop.permute.xlu0 %482
    %vm485 = vcmask 254977
    %486 = vst.msk [vmem:[#allocation2] sm:$0x2] %vm485, %v483
    %v487 = vrot.slane %v480, 1
    %488 = vrot.lane.b32.xlu0 %v487, 32
    %v489 = vpop.permute.xlu0 %488
    %v490 = vsel %vm273, %v489, 0
    %492 = vmatprep.subr.mxu0 0.0
    %493 = vmatpush1.msra.mxu0 %v188
    %494 = vmatprep.subr.mxu0 0.0
    %495 = vmatpush1.msra.mxu0 %v189
    %496 = vmatprep.subr.mxu0 0.0
    %497 = vmatpush1.msra.mxu0 %v190
    %498 = vmatprep.subr.mxu0 0.0
    %499 = vmatpush1.msra.mxu0 %v191
    %500 = vmatprep.subr.mxu0 0.0
    %501 = vmatpush1.msra.mxu0 0.0
    %502 = vmatprep.subr.mxu0 0.0
    %503 = vmatpush1.msra.mxu0 0.0
    %504 = vmatprep.subr.mxu0 0.0
    %505 = vmatpush1.msra.mxu0 0.0
    %506 = vmatprep.subr.mxu0 0.0
    %507 = vmatpush1.msra.mxu0 0.0
    %508 = vmatprep.subr.mxu0 0.0
    %509 = vmatpush1.msra.mxu0 0.0
    %510 = vmatprep.subr.mxu0 0.0
    %511 = vmatpush1.msra.mxu0 0.0
    %512 = vmatprep.subr.mxu0 0.0
    %513 = vmatpush1.msra.mxu0 0.0
    %514 = vmatprep.subr.mxu0 0.0
    %515 = vmatpush1.msra.mxu0 0.0
    %516 = vmatprep.subr.mxu0 0.0
    %517 = vmatpush1.msra.mxu0 0.0
    %518 = vmatprep.subr.mxu0 0.0
    %519 = vmatpush1.msra.mxu0 0.0
    %520 = vmatprep.subr.mxu0 0.0
    %521 = vmatpush1.msra.mxu0 0.0
    %522 = vmatprep.subr.mxu0 0.0
    %523 = vmatpush1.msra.mxu0 0.0
    %524 = vmatprep.subr.mxu0 0.0
    %525 = vmatpush1.msra.mxu0 0.0
    %526 = vmatprep.subr.mxu0 0.0
    %527 = vmatpush1.msra.mxu0 0.0
    %528 = vmatprep.subr.mxu0 0.0
    %529 = vmatpush1.msra.mxu0 0.0
    %530 = vmatprep.subr.mxu0 0.0
    %531 = vmatpush1.msra.mxu0 0.0
    %532 = vmatprep.subr.mxu0 0.0
    %533 = vmatpush1.msra.mxu0 0.0
    %534 = vmatprep.subr.mxu0 0.0
    %535 = vmatpush1.msra.mxu0 0.0
    %536 = vmatprep.subr.mxu0 0.0
    %537 = vmatpush1.msra.mxu0 0.0
    %538 = vmatprep.subr.mxu0 0.0
    %539 = vmatpush1.msra.mxu0 0.0
    %540 = vmatprep.subr.mxu0 0.0
    %541 = vmatpush1.msra.mxu0 0.0
    %542 = vmatprep.subr.mxu0 0.0
    %543 = vmatpush1.msra.mxu0 0.0
    %544 = vmatprep.subr.mxu0 0.0
    %545 = vmatpush1.msra.mxu0 0.0
    %546 = vmatprep.subr.mxu0 0.0
    %547 = vmatpush1.msra.mxu0 0.0
    %548 = vmatprep.subr.mxu0 0.0
    %549 = vmatpush1.msra.mxu0 0.0
    %550 = vmatprep.subr.mxu0 0.0
    %551 = vmatpush1.msra.mxu0 0.0
    %552 = vmatprep.subr.mxu0 0.0
    %553 = vmatpush1.msra.mxu0 0.0
    %554 = vmatprep.subr.mxu0 0.0
    %555 = vmatpush1.msra.mxu0 0.0
    %556 = vmatprep.mubr.f32.mxu0 0.0
    %557 = vmatmul.mubr.f32.gmra.mrb[0].mxu0 %v490
    %v558 = vpop.f32.mrb[0].mxu0
    %v559 = vadd.f32 0.0, %v558
    %v560 = vpop.f32.mrb[0].mxu0
    %561 = vdwg.mxu0
    %v563 = vrot.slane %v559, 6
    %v565 = vadd.f32 %v270, %v563
    %v566 = vxor.u32 %v565, 2147483648
    %v567 = vmul.f32 %v566, 1.442695
    %v568 = vpow.pop %v567
    %v569 = vadd.f32 %v568, 1.0
    %v570 = vrcp.pop %v569
    %v571 = vmul.f32 1.0, %v570
    %v572 = vtanh.pop %v565
    %v574 = vrot.slane %v474, 7
    %v576 = vmul.f32 %v571, %v574
    %578 = vrot.lane.b32.xlu0 %v572, 64
    %v579 = vpop.permute.xlu0 %578
    %v581 = vmul.f32 %v571, %v579
    %583 = vrot.lane.b32.xlu0 %v581, 32
    %v584 = vpop.permute.xlu0 %583
    %v586 = vadd.f32 %v576, %v584
    %v587 = vtanh.pop %v586
    %589 = vrot.lane.b32.xlu0 %v587, 64
    %v590 = vpop.permute.xlu0 %589
    %v592 = vmul.f32 %v571, %v590
    %594 = vrot.lane.b32.xlu0 %v592, 32
    %v595 = vpop.permute.xlu0 %594
    %vm597 = vcmask 256002
    %598 = vst.msk [vmem:[#allocation2] sm:$0x4] %vm597, %v595
    %v599 = vrot.slane %v592, 2
    %600 = vrot.lane.b32.xlu0 %v599, 32
    %v601 = vpop.permute.xlu0 %600
    %v602 = vsel %vm273, %v601, 0
    %604 = vmatprep.subr.mxu0 0.0
    %605 = vmatpush1.msra.mxu0 %v188
    %606 = vmatprep.subr.mxu0 0.0
    %607 = vmatpush1.msra.mxu0 %v189
    %608 = vmatprep.subr.mxu0 0.0
    %609 = vmatpush1.msra.mxu0 %v190
    %610 = vmatprep.subr.mxu0 0.0
    %611 = vmatpush1.msra.mxu0 %v191
    %612 = vmatprep.subr.mxu0 0.0
    %613 = vmatpush1.msra.mxu0 0.0
    %614 = vmatprep.subr.mxu0 0.0
    %615 = vmatpush1.msra.mxu0 0.0
    %616 = vmatprep.subr.mxu0 0.0
    %617 = vmatpush1.msra.mxu0 0.0
    %618 = vmatprep.subr.mxu0 0.0
    %619 = vmatpush1.msra.mxu0 0.0
    %620 = vmatprep.subr.mxu0 0.0
    %621 = vmatpush1.msra.mxu0 0.0
    %622 = vmatprep.subr.mxu0 0.0
    %623 = vmatpush1.msra.mxu0 0.0
    %624 = vmatprep.subr.mxu0 0.0
    %625 = vmatpush1.msra.mxu0 0.0
    %626 = vmatprep.subr.mxu0 0.0
    %627 = vmatpush1.msra.mxu0 0.0
    %628 = vmatprep.subr.mxu0 0.0
    %629 = vmatpush1.msra.mxu0 0.0
    %630 = vmatprep.subr.mxu0 0.0
    %631 = vmatpush1.msra.mxu0 0.0
    %632 = vmatprep.subr.mxu0 0.0
    %633 = vmatpush1.msra.mxu0 0.0
    %634 = vmatprep.subr.mxu0 0.0
    %635 = vmatpush1.msra.mxu0 0.0
    %636 = vmatprep.subr.mxu0 0.0
    %637 = vmatpush1.msra.mxu0 0.0
    %638 = vmatprep.subr.mxu0 0.0
    %639 = vmatpush1.msra.mxu0 0.0
    %640 = vmatprep.subr.mxu0 0.0
    %641 = vmatpush1.msra.mxu0 0.0
    %642 = vmatprep.subr.mxu0 0.0
    %643 = vmatpush1.msra.mxu0 0.0
    %644 = vmatprep.subr.mxu0 0.0
    %645 = vmatpush1.msra.mxu0 0.0
    %646 = vmatprep.subr.mxu0 0.0
    %647 = vmatpush1.msra.mxu0 0.0
    %648 = vmatprep.subr.mxu0 0.0
    %649 = vmatpush1.msra.mxu0 0.0
    %650 = vmatprep.subr.mxu0 0.0
    %651 = vmatpush1.msra.mxu0 0.0
    %652 = vmatprep.subr.mxu0 0.0
    %653 = vmatpush1.msra.mxu0 0.0
    %654 = vmatprep.subr.mxu0 0.0
    %655 = vmatpush1.msra.mxu0 0.0
    %656 = vmatprep.subr.mxu0 0.0
    %657 = vmatpush1.msra.mxu0 0.0
    %658 = vmatprep.subr.mxu0 0.0
    %659 = vmatpush1.msra.mxu0 0.0
    %660 = vmatprep.subr.mxu0 0.0
    %661 = vmatpush1.msra.mxu0 0.0
    %662 = vmatprep.subr.mxu0 0.0
    %663 = vmatpush1.msra.mxu0 0.0
    %664 = vmatprep.subr.mxu0 0.0
    %665 = vmatpush1.msra.mxu0 0.0
    %666 = vmatprep.subr.mxu0 0.0
    %667 = vmatpush1.msra.mxu0 0.0
    %668 = vmatprep.mubr.f32.mxu0 0.0
    %669 = vmatmul.mubr.f32.gmra.mrb[0].mxu0 %v602
    %v670 = vpop.f32.mrb[0].mxu0
    %v671 = vadd.f32 0.0, %v670
    %v672 = vpop.f32.mrb[0].mxu0
    %673 = vdwg.mxu0
    %v675 = vrot.slane %v671, 5
    %v677 = vadd.f32 %v270, %v675
    %v678 = vxor.u32 %v677, 2147483648
    %v679 = vmul.f32 %v678, 1.442695
    %v680 = vpow.pop %v679
    %v681 = vadd.f32 %v680, 1.0
    %v682 = vrcp.pop %v681
    %v683 = vmul.f32 1.0, %v682
    %v684 = vtanh.pop %v677
    %v686 = vrot.slane %v586, 7
    %v688 = vmul.f32 %v683, %v686
    %690 = vrot.lane.b32.xlu0 %v684, 64
    %v691 = vpop.permute.xlu0 %690
    %v693 = vmul.f32 %v683, %v691
    %695 = vrot.lane.b32.xlu0 %v693, 32
    %v696 = vpop.permute.xlu0 %695
    %v698 = vadd.f32 %v688, %v696
    %v699 = vtanh.pop %v698
    %701 = vrot.lane.b32.xlu0 %v699, 64
    %v702 = vpop.permute.xlu0 %701
    %v704 = vmul.f32 %v683, %v702
    %706 = vrot.lane.b32.xlu0 %v704, 32
    %v707 = vpop.permute.xlu0 %706
    %vm709 = vcmask 257027
    %710 = vst.msk [vmem:[#allocation2] sm:$0x8] %vm709, %v707
    %v711 = vrot.slane %v704, 3
    %712 = vrot.lane.b32.xlu0 %v711, 32
    %v713 = vpop.permute.xlu0 %712
    %v714 = vsel %vm273, %v713, 0
    %716 = vmatprep.subr.mxu0 0.0
    %717 = vmatpush1.msra.mxu0 %v188
    %718 = vmatprep.subr.mxu0 0.0
    %719 = vmatpush1.msra.mxu0 %v189
    %720 = vmatprep.subr.mxu0 0.0
    %721 = vmatpush1.msra.mxu0 %v190
    %722 = vmatprep.subr.mxu0 0.0
    %723 = vmatpush1.msra.mxu0 %v191
    %724 = vmatprep.subr.mxu0 0.0
    %725 = vmatpush1.msra.mxu0 0.0
    %726 = vmatprep.subr.mxu0 0.0
    %727 = vmatpush1.msra.mxu0 0.0
    %728 = vmatprep.subr.mxu0 0.0
    %729 = vmatpush1.msra.mxu0 0.0
    %730 = vmatprep.subr.mxu0 0.0
    %731 = vmatpush1.msra.mxu0 0.0
    %732 = vmatprep.subr.mxu0 0.0
    %733 = vmatpush1.msra.mxu0 0.0
    %734 = vmatprep.subr.mxu0 0.0
    %735 = vmatpush1.msra.mxu0 0.0
    %736 = vmatprep.subr.mxu0 0.0
    %737 = vmatpush1.msra.mxu0 0.0
    %738 = vmatprep.subr.mxu0 0.0
    %739 = vmatpush1.msra.mxu0 0.0
    %740 = vmatprep.subr.mxu0 0.0
    %741 = vmatpush1.msra.mxu0 0.0
    %742 = vmatprep.subr.mxu0 0.0
    %743 = vmatpush1.msra.mxu0 0.0
    %744 = vmatprep.subr.mxu0 0.0
    %745 = vmatpush1.msra.mxu0 0.0
    %746 = vmatprep.subr.mxu0 0.0
    %747 = vmatpush1.msra.mxu0 0.0
    %748 = vmatprep.subr.mxu0 0.0
    %749 = vmatpush1.msra.mxu0 0.0
    %750 = vmatprep.subr.mxu0 0.0
    %751 = vmatpush1.msra.mxu0 0.0
    %752 = vmatprep.subr.mxu0 0.0
    %753 = vmatpush1.msra.mxu0 0.0
    %754 = vmatprep.subr.mxu0 0.0
    %755 = vmatpush1.msra.mxu0 0.0
    %756 = vmatprep.subr.mxu0 0.0
    %757 = vmatpush1.msra.mxu0 0.0
    %758 = vmatprep.subr.mxu0 0.0
    %759 = vmatpush1.msra.mxu0 0.0
    %760 = vmatprep.subr.mxu0 0.0
    %761 = vmatpush1.msra.mxu0 0.0
    %762 = vmatprep.subr.mxu0 0.0
    %763 = vmatpush1.msra.mxu0 0.0
    %764 = vmatprep.subr.mxu0 0.0
    %765 = vmatpush1.msra.mxu0 0.0
    %766 = vmatprep.subr.mxu0 0.0
    %767 = vmatpush1.msra.mxu0 0.0
    %768 = vmatprep.subr.mxu0 0.0
    %769 = vmatpush1.msra.mxu0 0.0
    %770 = vmatprep.subr.mxu0 0.0
    %771 = vmatpush1.msra.mxu0 0.0
    %772 = vmatprep.subr.mxu0 0.0
    %773 = vmatpush1.msra.mxu0 0.0
    %774 = vmatprep.subr.mxu0 0.0
    %775 = vmatpush1.msra.mxu0 0.0
    %776 = vmatprep.subr.mxu0 0.0
    %777 = vmatpush1.msra.mxu0 0.0
    %778 = vmatprep.subr.mxu0 0.0
    %779 = vmatpush1.msra.mxu0 0.0
    %780 = vmatprep.mubr.f32.mxu0 0.0
    %781 = vmatmul.mubr.f32.gmra.mrb[0].mxu0 %v714
    %v782 = vpop.f32.mrb[0].mxu0
    %v783 = vadd.f32 0.0, %v782
    %v784 = vpop.f32.mrb[0].mxu0
    %785 = vdwg.mxu0
    %v787 = vrot.slane %v783, 4
    %v789 = vadd.f32 %v270, %v787
    %v790 = vxor.u32 %v789, 2147483648
    %v791 = vmul.f32 %v790, 1.442695
    %v792 = vpow.pop %v791
    %v793 = vadd.f32 %v792, 1.0
    %v794 = vrcp.pop %v793
    %v795 = vmul.f32 1.0, %v794
    %v796 = vtanh.pop %v789
    %v798 = vrot.slane %v698, 7
    %v800 = vmul.f32 %v795, %v798
    %802 = vrot.lane.b32.xlu0 %v796, 64
    %v803 = vpop.permute.xlu0 %802
    %v805 = vmul.f32 %v795, %v803
    %807 = vrot.lane.b32.xlu0 %v805, 32
    %v808 = vpop.permute.xlu0 %807
    %v810 = vadd.f32 %v800, %v808
    %v811 = vtanh.pop %v810
    %813 = vrot.lane.b32.xlu0 %v811, 64
    %v814 = vpop.permute.xlu0 %813
    %v816 = vmul.f32 %v795, %v814
    %818 = vrot.lane.b32.xlu0 %v816, 32
    %v819 = vpop.permute.xlu0 %818
    %vm821 = vcmask 258052
    %822 = vst.msk [vmem:[#allocation2] sm:$0x10] %vm821, %v819
    %v823 = vrot.slane %v816, 4
    %824 = vrot.lane.b32.xlu0 %v823, 32
    %v825 = vpop.permute.xlu0 %824
    %v826 = vsel %vm273, %v825, 0
    %828 = vmatprep.subr.mxu0 0.0
    %829 = vmatpush1.msra.mxu0 %v188
    %830 = vmatprep.subr.mxu0 0.0
    %831 = vmatpush1.msra.mxu0 %v189
    %832 = vmatprep.subr.mxu0 0.0
    %833 = vmatpush1.msra.mxu0 %v190
    %834 = vmatprep.subr.mxu0 0.0
    %835 = vmatpush1.msra.mxu0 %v191
    %836 = vmatprep.subr.mxu0 0.0
    %837 = vmatpush1.msra.mxu0 0.0
    %838 = vmatprep.subr.mxu0 0.0
    %839 = vmatpush1.msra.mxu0 0.0
    %840 = vmatprep.subr.mxu0 0.0
    %841 = vmatpush1.msra.mxu0 0.0
    %842 = vmatprep.subr.mxu0 0.0
    %843 = vmatpush1.msra.mxu0 0.0
    %844 = vmatprep.subr.mxu0 0.0
    %845 = vmatpush1.msra.mxu0 0.0
    %846 = vmatprep.subr.mxu0 0.0
    %847 = vmatpush1.msra.mxu0 0.0
    %848 = vmatprep.subr.mxu0 0.0
    %849 = vmatpush1.msra.mxu0 0.0
    %850 = vmatprep.subr.mxu0 0.0
    %851 = vmatpush1.msra.mxu0 0.0
    %852 = vmatprep.subr.mxu0 0.0
    %853 = vmatpush1.msra.mxu0 0.0
    %854 = vmatprep.subr.mxu0 0.0
    %855 = vmatpush1.msra.mxu0 0.0
    %856 = vmatprep.subr.mxu0 0.0
    %857 = vmatpush1.msra.mxu0 0.0
    %858 = vmatprep.subr.mxu0 0.0
    %859 = vmatpush1.msra.mxu0 0.0
    %860 = vmatprep.subr.mxu0 0.0
    %861 = vmatpush1.msra.mxu0 0.0
    %862 = vmatprep.subr.mxu0 0.0
    %863 = vmatpush1.msra.mxu0 0.0
    %864 = vmatprep.subr.mxu0 0.0
    %865 = vmatpush1.msra.mxu0 0.0
    %866 = vmatprep.subr.mxu0 0.0
    %867 = vmatpush1.msra.mxu0 0.0
    %868 = vmatprep.subr.mxu0 0.0
    %869 = vmatpush1.msra.mxu0 0.0
    %870 = vmatprep.subr.mxu0 0.0
    %871 = vmatpush1.msra.mxu0 0.0
    %872 = vmatprep.subr.mxu0 0.0
    %873 = vmatpush1.msra.mxu0 0.0
    %874 = vmatprep.subr.mxu0 0.0
    %875 = vmatpush1.msra.mxu0 0.0
    %876 = vmatprep.subr.mxu0 0.0
    %877 = vmatpush1.msra.mxu0 0.0
    %878 = vmatprep.subr.mxu0 0.0
    %879 = vmatpush1.msra.mxu0 0.0
    %880 = vmatprep.subr.mxu0 0.0
    %881 = vmatpush1.msra.mxu0 0.0
    %882 = vmatprep.subr.mxu0 0.0
    %883 = vmatpush1.msra.mxu0 0.0
    %884 = vmatprep.subr.mxu0 0.0
    %885 = vmatpush1.msra.mxu0 0.0
    %886 = vmatprep.subr.mxu0 0.0
    %887 = vmatpush1.msra.mxu0 0.0
    %888 = vmatprep.subr.mxu0 0.0
    %889 = vmatpush1.msra.mxu0 0.0
    %890 = vmatprep.subr.mxu0 0.0
    %891 = vmatpush1.msra.mxu0 0.0
    %892 = vmatprep.mubr.f32.mxu0 0.0
    %893 = vmatmul.mubr.f32.gmra.mrb[0].mxu0 %v826
    %v894 = vpop.f32.mrb[0].mxu0
    %v895 = vadd.f32 0.0, %v894
    %v896 = vpop.f32.mrb[0].mxu0
    %897 = vdwg.mxu0
    %v899 = vrot.slane %v895, 3
    %v901 = vadd.f32 %v270, %v899
    %v902 = vxor.u32 %v901, 2147483648
    %v903 = vmul.f32 %v902, 1.442695
    %v904 = vpow.pop %v903
    %v905 = vadd.f32 %v904, 1.0
    %v906 = vrcp.pop %v905
    %v907 = vmul.f32 1.0, %v906
    %v908 = vtanh.pop %v901
    %v910 = vrot.slane %v810, 7
    %v912 = vmul.f32 %v907, %v910
    %914 = vrot.lane.b32.xlu0 %v908, 64
    %v915 = vpop.permute.xlu0 %914
    %v917 = vmul.f32 %v907, %v915
    %919 = vrot.lane.b32.xlu0 %v917, 32
    %v920 = vpop.permute.xlu0 %919
    %v922 = vadd.f32 %v912, %v920
    %v923 = vtanh.pop %v922
    %925 = vrot.lane.b32.xlu0 %v923, 64
    %v926 = vpop.permute.xlu0 %925
    %v928 = vmul.f32 %v907, %v926
    %930 = vrot.lane.b32.xlu0 %v928, 32
    %v931 = vpop.permute.xlu0 %930
    %vm933 = vcmask 259077
    %934 = vst.msk [vmem:[#allocation2] sm:$0x20] %vm933, %v931
    %v935 = vrot.slane %v928, 5
    %936 = vrot.lane.b32.xlu0 %v935, 32
    %v937 = vpop.permute.xlu0 %936
    %v938 = vsel %vm273, %v937, 0
    %940 = vmatprep.subr.mxu0 0.0
    %941 = vmatpush1.msra.mxu0 %v188
    %942 = vmatprep.subr.mxu0 0.0
    %943 = vmatpush1.msra.mxu0 %v189
    %944 = vmatprep.subr.mxu0 0.0
    %945 = vmatpush1.msra.mxu0 %v190
    %946 = vmatprep.subr.mxu0 0.0
    %947 = vmatpush1.msra.mxu0 %v191
    %948 = vmatprep.subr.mxu0 0.0
    %949 = vmatpush1.msra.mxu0 0.0
    %950 = vmatprep.subr.mxu0 0.0
    %951 = vmatpush1.msra.mxu0 0.0
    %952 = vmatprep.subr.mxu0 0.0
    %953 = vmatpush1.msra.mxu0 0.0
    %954 = vmatprep.subr.mxu0 0.0
    %955 = vmatpush1.msra.mxu0 0.0
    %956 = vmatprep.subr.mxu0 0.0
    %957 = vmatpush1.msra.mxu0 0.0
    %958 = vmatprep.subr.mxu0 0.0
    %959 = vmatpush1.msra.mxu0 0.0
    %960 = vmatprep.subr.mxu0 0.0
    %961 = vmatpush1.msra.mxu0 0.0
    %962 = vmatprep.subr.mxu0 0.0
    %963 = vmatpush1.msra.mxu0 0.0
    %964 = vmatprep.subr.mxu0 0.0
    %965 = vmatpush1.msra.mxu0 0.0
    %966 = vmatprep.subr.mxu0 0.0
    %967 = vmatpush1.msra.mxu0 0.0
    %968 = vmatprep.subr.mxu0 0.0
    %969 = vmatpush1.msra.mxu0 0.0
    %970 = vmatprep.subr.mxu0 0.0
    %971 = vmatpush1.msra.mxu0 0.0
    %972 = vmatprep.subr.mxu0 0.0
    %973 = vmatpush1.msra.mxu0 0.0
    %974 = vmatprep.subr.mxu0 0.0
    %975 = vmatpush1.msra.mxu0 0.0
    %976 = vmatprep.subr.mxu0 0.0
    %977 = vmatpush1.msra.mxu0 0.0
    %978 = vmatprep.subr.mxu0 0.0
    %979 = vmatpush1.msra.mxu0 0.0
    %980 = vmatprep.subr.mxu0 0.0
    %981 = vmatpush1.msra.mxu0 0.0
    %982 = vmatprep.subr.mxu0 0.0
    %983 = vmatpush1.msra.mxu0 0.0
    %984 = vmatprep.subr.mxu0 0.0
    %985 = vmatpush1.msra.mxu0 0.0
    %986 = vmatprep.subr.mxu0 0.0
    %987 = vmatpush1.msra.mxu0 0.0
    %988 = vmatprep.subr.mxu0 0.0
    %989 = vmatpush1.msra.mxu0 0.0
    %990 = vmatprep.subr.mxu0 0.0
    %991 = vmatpush1.msra.mxu0 0.0
    %992 = vmatprep.subr.mxu0 0.0
    %993 = vmatpush1.msra.mxu0 0.0
    %994 = vmatprep.subr.mxu0 0.0
    %995 = vmatpush1.msra.mxu0 0.0
    %996 = vmatprep.subr.mxu0 0.0
    %997 = vmatpush1.msra.mxu0 0.0
    %998 = vmatprep.subr.mxu0 0.0
    %999 = vmatpush1.msra.mxu0 0.0
    %1000 = vmatprep.subr.mxu0 0.0
    %1001 = vmatpush1.msra.mxu0 0.0
    %1002 = vmatprep.subr.mxu0 0.0
    %1003 = vmatpush1.msra.mxu0 0.0
    %1004 = vmatprep.mubr.f32.mxu0 0.0
    %1005 = vmatmul.mubr.f32.gmra.mrb[0].mxu0 %v938
    %v1006 = vpop.f32.mrb[0].mxu0
    %v1007 = vadd.f32 0.0, %v1006
    %v1008 = vpop.f32.mrb[0].mxu0
    %1009 = vdwg.mxu0
    %v1011 = vrot.slane %v1007, 2
    %v1013 = vadd.f32 %v270, %v1011
    %v1014 = vxor.u32 %v1013, 2147483648
    %v1015 = vmul.f32 %v1014, 1.442695
    %v1016 = vpow.pop %v1015
    %v1017 = vadd.f32 %v1016, 1.0
    %v1018 = vrcp.pop %v1017
    %v1019 = vmul.f32 1.0, %v1018
    %v1020 = vtanh.pop %v1013
    %v1022 = vrot.slane %v922, 7
    %v1024 = vmul.f32 %v1019, %v1022
    %1026 = vrot.lane.b32.xlu0 %v1020, 64
    %v1027 = vpop.permute.xlu0 %1026
    %v1029 = vmul.f32 %v1019, %v1027
    %1031 = vrot.lane.b32.xlu0 %v1029, 32
    %v1032 = vpop.permute.xlu0 %1031
    %v1034 = vadd.f32 %v1024, %v1032
    %v1035 = vtanh.pop %v1034
    %1037 = vrot.lane.b32.xlu0 %v1035, 64
    %v1038 = vpop.permute.xlu0 %1037
    %v1040 = vmul.f32 %v1019, %v1038
    %1042 = vrot.lane.b32.xlu0 %v1040, 32
    %v1043 = vpop.permute.xlu0 %1042
    %vm1045 = vcmask 260102
    %1046 = vst.msk [vmem:[#allocation2] sm:$0x40] %vm1045, %v1043
    %v1047 = vrot.slane %v1040, 6
    %1048 = vrot.lane.b32.xlu0 %v1047, 32
    %v1049 = vpop.permute.xlu0 %1048
    %v1050 = vsel %vm273, %v1049, 0
    %1052 = vmatprep.subr.mxu0 0.0
    %1053 = vmatpush1.msra.mxu0 %v188
    %1054 = vmatprep.subr.mxu0 0.0
    %1055 = vmatpush1.msra.mxu0 %v189
    %1056 = vmatprep.subr.mxu0 0.0
    %1057 = vmatpush1.msra.mxu0 %v190
    %1058 = vmatprep.subr.mxu0 0.0
    %1059 = vmatpush1.msra.mxu0 %v191
    %1060 = vmatprep.subr.mxu0 0.0
    %1061 = vmatpush1.msra.mxu0 0.0
    %1062 = vmatprep.subr.mxu0 0.0
    %1063 = vmatpush1.msra.mxu0 0.0
    %1064 = vmatprep.subr.mxu0 0.0
    %1065 = vmatpush1.msra.mxu0 0.0
    %1066 = vmatprep.subr.mxu0 0.0
    %1067 = vmatpush1.msra.mxu0 0.0
    %1068 = vmatprep.subr.mxu0 0.0
    %1069 = vmatpush1.msra.mxu0 0.0
    %1070 = vmatprep.subr.mxu0 0.0
    %1071 = vmatpush1.msra.mxu0 0.0
    %1072 = vmatprep.subr.mxu0 0.0
    %1073 = vmatpush1.msra.mxu0 0.0
    %1074 = vmatprep.subr.mxu0 0.0
    %1075 = vmatpush1.msra.mxu0 0.0
    %1076 = vmatprep.subr.mxu0 0.0
    %1077 = vmatpush1.msra.mxu0 0.0
    %1078 = vmatprep.subr.mxu0 0.0
    %1079 = vmatpush1.msra.mxu0 0.0
    %1080 = vmatprep.subr.mxu0 0.0
    %1081 = vmatpush1.msra.mxu0 0.0
    %1082 = vmatprep.subr.mxu0 0.0
    %1083 = vmatpush1.msra.mxu0 0.0
    %1084 = vmatprep.subr.mxu0 0.0
    %1085 = vmatpush1.msra.mxu0 0.0
    %1086 = vmatprep.subr.mxu0 0.0
    %1087 = vmatpush1.msra.mxu0 0.0
    %1088 = vmatprep.subr.mxu0 0.0
    %1089 = vmatpush1.msra.mxu0 0.0
    %1090 = vmatprep.subr.mxu0 0.0
    %1091 = vmatpush1.msra.mxu0 0.0
    %1092 = vmatprep.subr.mxu0 0.0
    %1093 = vmatpush1.msra.mxu0 0.0
    %1094 = vmatprep.subr.mxu0 0.0
    %1095 = vmatpush1.msra.mxu0 0.0
    %1096 = vmatprep.subr.mxu0 0.0
    %1097 = vmatpush1.msra.mxu0 0.0
    %1098 = vmatprep.subr.mxu0 0.0
    %1099 = vmatpush1.msra.mxu0 0.0
    %1100 = vmatprep.subr.mxu0 0.0
    %1101 = vmatpush1.msra.mxu0 0.0
    %1102 = vmatprep.subr.mxu0 0.0
    %1103 = vmatpush1.msra.mxu0 0.0
    %1104 = vmatprep.subr.mxu0 0.0
    %1105 = vmatpush1.msra.mxu0 0.0
    %1106 = vmatprep.subr.mxu0 0.0
    %1107 = vmatpush1.msra.mxu0 0.0
    %1108 = vmatprep.subr.mxu0 0.0
    %1109 = vmatpush1.msra.mxu0 0.0
    %1110 = vmatprep.subr.mxu0 0.0
    %1111 = vmatpush1.msra.mxu0 0.0
    %1112 = vmatprep.subr.mxu0 0.0
    %1113 = vmatpush1.msra.mxu0 0.0
    %1114 = vmatprep.subr.mxu0 0.0
    %1115 = vmatpush1.msra.mxu0 0.0
    %1116 = vmatprep.mubr.f32.mxu0 0.0
    %1117 = vmatmul.mubr.f32.gmra.mrb[0].mxu0 %v1050
    %v1118 = vpop.f32.mrb[0].mxu0
    %v1119 = vadd.f32 0.0, %v1118
    %v1120 = vpop.f32.mrb[0].mxu0
    %1121 = vdwg.mxu0
    %v1123 = vrot.slane %v1119, 1
    %v1125 = vadd.f32 %v270, %v1123
    %v1126 = vxor.u32 %v1125, 2147483648
    %v1127 = vmul.f32 %v1126, 1.442695
    %v1128 = vpow.pop %v1127
    %v1129 = vadd.f32 %v1128, 1.0
    %v1130 = vrcp.pop %v1129
    %v1131 = vmul.f32 1.0, %v1130
    %v1132 = vtanh.pop %v1125
    %v1134 = vrot.slane %v1034, 7
    %v1136 = vmul.f32 %v1131, %v1134
    %1138 = vrot.lane.b32.xlu0 %v1132, 64
    %v1139 = vpop.permute.xlu0 %1138
    %v1141 = vmul.f32 %v1131, %v1139
    %1143 = vrot.lane.b32.xlu0 %v1141, 32
    %v1144 = vpop.permute.xlu0 %1143
    %v1146 = vadd.f32 %v1136, %v1144
    %v1147 = vtanh.pop %v1146
    %1149 = vrot.lane.b32.xlu0 %v1147, 64
    %v1150 = vpop.permute.xlu0 %1149
    %v1152 = vmul.f32 %v1131, %v1150
    %1154 = vrot.lane.b32.xlu0 %v1152, 32
    %v1155 = vpop.permute.xlu0 %1154
    %vm1157 = vcmask 261127
    %1158 = vst.msk [vmem:[#allocation2] sm:$0x80] %vm1157, %v1155
    %v1159 = vld [vmem:[#allocation2] sm:$0xff]
    %v1160 = vld [vmem:[#allocation7] sm:$0xff]
    %v1161 = vld [vmem:[#allocation7 + $0x8] sm:$0xff]
    %v1162 = vld [vmem:[#allocation7 + $0x10] sm:$0xff]
    %v1163 = vld [vmem:[#allocation7 + $0x18] sm:$0xff]
    %v1164 = vld [vmem:[#allocation8] sm:$0xff]
    %v1165 = vld [vmem:[#allocation8 + $0x8] sm:$0xff]
    %v1166 = vld [vmem:[#allocation8 + $0x10] sm:$0xff]
    %v1167 = vld [vmem:[#allocation8 + $0x18] sm:$0xff]
    %v1168 = vld [vmem:[%s8] sm:$0x1]
    %v1170 = vlaneseq
    %v1171 = vshrl.u32 %v1170, 7
    %v1172 = vsub.s32 0, %v1171
    %v1173 = vrot.slane %v1168, %v1172
    %v1176 = vsel %vm273, %v1159, 0
    %1178 = vmatprep.subr.mxu0 0.0
    %1179 = vmatpush1.msra.mxu0 %v1160
    %1180 = vmatprep.subr.mxu0 0.0
    %1181 = vmatpush1.msra.mxu0 %v1161
    %1182 = vmatprep.subr.mxu0 0.0
    %1183 = vmatpush1.msra.mxu0 %v1162
    %1184 = vmatprep.subr.mxu0 0.0
    %1185 = vmatpush1.msra.mxu0 %v1163
    %1186 = vmatprep.subr.mxu0 0.0
    %1187 = vmatpush1.msra.mxu0 0.0
    %1188 = vmatprep.subr.mxu0 0.0
    %1189 = vmatpush1.msra.mxu0 0.0
    %1190 = vmatprep.subr.mxu0 0.0
    %1191 = vmatpush1.msra.mxu0 0.0
    %1192 = vmatprep.subr.mxu0 0.0
    %1193 = vmatpush1.msra.mxu0 0.0
    %1194 = vmatprep.subr.mxu0 0.0
    %1195 = vmatpush1.msra.mxu0 0.0
    %1196 = vmatprep.subr.mxu0 0.0
    %1197 = vmatpush1.msra.mxu0 0.0
    %1198 = vmatprep.subr.mxu0 0.0
    %1199 = vmatpush1.msra.mxu0 0.0
    %1200 = vmatprep.subr.mxu0 0.0
    %1201 = vmatpush1.msra.mxu0 0.0
    %1202 = vmatprep.subr.mxu0 0.0
    %1203 = vmatpush1.msra.mxu0 0.0
    %1204 = vmatprep.subr.mxu0 0.0
    %1205 = vmatpush1.msra.mxu0 0.0
    %1206 = vmatprep.subr.mxu0 0.0
    %1207 = vmatpush1.msra.mxu0 0.0
    %1208 = vmatprep.subr.mxu0 0.0
    %1209 = vmatpush1.msra.mxu0 0.0
    %1210 = vmatprep.subr.mxu0 0.0
    %1211 = vmatpush1.msra.mxu0 0.0
    %1212 = vmatprep.subr.mxu0 0.0
    %1213 = vmatpush1.msra.mxu0 0.0
    %1214 = vmatprep.subr.mxu0 0.0
    %1215 = vmatpush1.msra.mxu0 0.0
    %1216 = vmatprep.subr.mxu0 0.0
    %1217 = vmatpush1.msra.mxu0 0.0
    %1218 = vmatprep.subr.mxu0 0.0
    %1219 = vmatpush1.msra.mxu0 0.0
    %1220 = vmatprep.subr.mxu0 0.0
    %1221 = vmatpush1.msra.mxu0 0.0
    %1222 = vmatprep.subr.mxu0 0.0
    %1223 = vmatpush1.msra.mxu0 0.0
    %1224 = vmatprep.subr.mxu0 0.0
    %1225 = vmatpush1.msra.mxu0 0.0
    %1226 = vmatprep.subr.mxu0 0.0
    %1227 = vmatpush1.msra.mxu0 0.0
    %1228 = vmatprep.subr.mxu0 0.0
    %1229 = vmatpush1.msra.mxu0 0.0
    %1230 = vmatprep.subr.mxu0 0.0
    %1231 = vmatpush1.msra.mxu0 0.0
    %1232 = vmatprep.subr.mxu0 0.0
    %1233 = vmatpush1.msra.mxu0 0.0
    %1234 = vmatprep.subr.mxu0 0.0
    %1235 = vmatpush1.msra.mxu0 0.0
    %1236 = vmatprep.subr.mxu0 0.0
    %1237 = vmatpush1.msra.mxu0 0.0
    %1238 = vmatprep.subr.mxu0 0.0
    %1239 = vmatpush1.msra.mxu0 0.0
    %1240 = vmatprep.subr.mxu0 0.0
    %1241 = vmatpush1.msra.mxu0 0.0
    %1242 = vmatprep.mubr.f32.mxu0 0.0
    %1243 = vmatmul.mubr.f32.gmra.mrb[0].mxu0 %v1176
    %v1244 = vpop.f32.mrb[0].mxu0
    %v1245 = vadd.f32 %v1173, %v1244
    %v1246 = vpop.f32.mrb[0].mxu0
    %1247 = vdwg.mxu0
    %1248 = vmatprep.subr.mxu0 0.0
    %1249 = vmatpush1.msra.mxu0 %v1164
    %1250 = vmatprep.subr.mxu0 0.0
    %1251 = vmatpush1.msra.mxu0 %v1165
    %1252 = vmatprep.subr.mxu0 0.0
    %1253 = vmatpush1.msra.mxu0 %v1166
    %1254 = vmatprep.subr.mxu0 0.0
    %1255 = vmatpush1.msra.mxu0 %v1167
    %1256 = vmatprep.subr.mxu0 0.0
    %1257 = vmatpush1.msra.mxu0 0.0
    %1258 = vmatprep.subr.mxu0 0.0
    %1259 = vmatpush1.msra.mxu0 0.0
    %1260 = vmatprep.subr.mxu0 0.0
    %1261 = vmatpush1.msra.mxu0 0.0
    %1262 = vmatprep.subr.mxu0 0.0
    %1263 = vmatpush1.msra.mxu0 0.0
    %1264 = vmatprep.subr.mxu0 0.0
    %1265 = vmatpush1.msra.mxu0 0.0
    %1266 = vmatprep.subr.mxu0 0.0
    %1267 = vmatpush1.msra.mxu0 0.0
    %1268 = vmatprep.subr.mxu0 0.0
    %1269 = vmatpush1.msra.mxu0 0.0
    %1270 = vmatprep.subr.mxu0 0.0
    %1271 = vmatpush1.msra.mxu0 0.0
    %1272 = vmatprep.subr.mxu0 0.0
    %1273 = vmatpush1.msra.mxu0 0.0
    %1274 = vmatprep.subr.mxu0 0.0
    %1275 = vmatpush1.msra.mxu0 0.0
    %1276 = vmatprep.subr.mxu0 0.0
    %1277 = vmatpush1.msra.mxu0 0.0
    %1278 = vmatprep.subr.mxu0 0.0
    %1279 = vmatpush1.msra.mxu0 0.0
    %1280 = vmatprep.subr.mxu0 0.0
    %1281 = vmatpush1.msra.mxu0 0.0
    %1282 = vmatprep.subr.mxu0 0.0
    %1283 = vmatpush1.msra.mxu0 0.0
    %1284 = vmatprep.subr.mxu0 0.0
    %1285 = vmatpush1.msra.mxu0 0.0
    %1286 = vmatprep.subr.mxu0 0.0
    %1287 = vmatpush1.msra.mxu0 0.0
    %1288 = vmatprep.subr.mxu0 0.0
    %1289 = vmatpush1.msra.mxu0 0.0
    %1290 = vmatprep.subr.mxu0 0.0
    %1291 = vmatpush1.msra.mxu0 0.0
    %1292 = vmatprep.subr.mxu0 0.0
    %1293 = vmatpush1.msra.mxu0 0.0
    %1294 = vmatprep.subr.mxu0 0.0
    %1295 = vmatpush1.msra.mxu0 0.0
    %1296 = vmatprep.subr.mxu0 0.0
    %1297 = vmatpush1.msra.mxu0 0.0
    %1298 = vmatprep.subr.mxu0 0.0
    %1299 = vmatpush1.msra.mxu0 0.0
    %1300 = vmatprep.subr.mxu0 0.0
    %1301 = vmatpush1.msra.mxu0 0.0
    %1302 = vmatprep.subr.mxu0 0.0
    %1303 = vmatpush1.msra.mxu0 0.0
    %1304 = vmatprep.subr.mxu0 0.0
    %1305 = vmatpush1.msra.mxu0 0.0
    %1306 = vmatprep.subr.mxu0 0.0
    %1307 = vmatpush1.msra.mxu0 0.0
    %1308 = vmatprep.subr.mxu0 0.0
    %1309 = vmatpush1.msra.mxu0 0.0
    %1310 = vmatprep.subr.mxu0 0.0
    %1311 = vmatpush1.msra.mxu0 0.0
    %1312 = vmatprep.mubr.f32.mxu0 0.0
    %1313 = vmatmul.mubr.f32.gmra.mrb[0].mxu0 %v275
    %v1314 = vpop.f32.mrb[0].mxu0
    %v1315 = vadd.f32 0.0, %v1314
    %v1316 = vpop.f32.mrb[0].mxu0
    %1317 = vdwg.mxu0
    %v1318 = vadd.f32 %v1245, %v1315
    %v1319 = vxor.u32 %v1318, 2147483648
    %v1320 = vmul.f32 %v1319, 1.442695
    %v1321 = vpow.pop %v1320
    %v1322 = vadd.f32 %v1321, 1.0
    %v1323 = vrcp.pop %v1322
    %v1324 = vmul.f32 1.0, %v1323
    %v1325 = vtanh.pop %v1318
    %v1326 = vmul.f32 %v1324, 0.0
    %1328 = vrot.lane.b32.xlu0 %v1325, 64
    %v1329 = vpop.permute.xlu0 %1328
    %v1331 = vmul.f32 %v1324, %v1329
    %1333 = vrot.lane.b32.xlu0 %v1331, 32
    %v1334 = vpop.permute.xlu0 %1333
    %v1336 = vadd.f32 %v1326, %v1334
    %v1337 = vtanh.pop %v1336
    %1339 = vrot.lane.b32.xlu0 %v1337, 64
    %v1340 = vpop.permute.xlu0 %1339
    %v1342 = vmul.f32 %v1324, %v1340
    %1344 = vrot.lane.b32.xlu0 %v1342, 32
    %v1345 = vpop.permute.xlu0 %1344
    %1347 = vst.msk [vmem:[#allocation2] sm:$0x1] %vm376, %v1345
    %v1348 = vsel %vm273, %v1345, 0
    %1350 = vmatprep.subr.mxu0 0.0
    %1351 = vmatpush1.msra.mxu0 %v1164
    %1352 = vmatprep.subr.mxu0 0.0
    %1353 = vmatpush1.msra.mxu0 %v1165
    %1354 = vmatprep.subr.mxu0 0.0
    %1355 = vmatpush1.msra.mxu0 %v1166
    %1356 = vmatprep.subr.mxu0 0.0
    %1357 = vmatpush1.msra.mxu0 %v1167
    %1358 = vmatprep.subr.mxu0 0.0
    %1359 = vmatpush1.msra.mxu0 0.0
    %1360 = vmatprep.subr.mxu0 0.0
    %1361 = vmatpush1.msra.mxu0 0.0
    %1362 = vmatprep.subr.mxu0 0.0
    %1363 = vmatpush1.msra.mxu0 0.0
    %1364 = vmatprep.subr.mxu0 0.0
    %1365 = vmatpush1.msra.mxu0 0.0
    %1366 = vmatprep.subr.mxu0 0.0
    %1367 = vmatpush1.msra.mxu0 0.0
    %1368 = vmatprep.subr.mxu0 0.0
    %1369 = vmatpush1.msra.mxu0 0.0
    %1370 = vmatprep.subr.mxu0 0.0
    %1371 = vmatpush1.msra.mxu0 0.0
    %1372 = vmatprep.subr.mxu0 0.0
    %1373 = vmatpush1.msra.mxu0 0.0
    %1374 = vmatprep.subr.mxu0 0.0
    %1375 = vmatpush1.msra.mxu0 0.0
    %1376 = vmatprep.subr.mxu0 0.0
    %1377 = vmatpush1.msra.mxu0 0.0
    %1378 = vmatprep.subr.mxu0 0.0
    %1379 = vmatpush1.msra.mxu0 0.0
    %1380 = vmatprep.subr.mxu0 0.0
    %1381 = vmatpush1.msra.mxu0 0.0
    %1382 = vmatprep.subr.mxu0 0.0
    %1383 = vmatpush1.msra.mxu0 0.0
    %1384 = vmatprep.subr.mxu0 0.0
    %1385 = vmatpush1.msra.mxu0 0.0
    %1386 = vmatprep.subr.mxu0 0.0
    %1387 = vmatpush1.msra.mxu0 0.0
    %1388 = vmatprep.subr.mxu0 0.0
    %1389 = vmatpush1.msra.mxu0 0.0
    %1390 = vmatprep.subr.mxu0 0.0
    %1391 = vmatpush1.msra.mxu0 0.0
    %1392 = vmatprep.subr.mxu0 0.0
    %1393 = vmatpush1.msra.mxu0 0.0
    %1394 = vmatprep.subr.mxu0 0.0
    %1395 = vmatpush1.msra.mxu0 0.0
    %1396 = vmatprep.subr.mxu0 0.0
    %1397 = vmatpush1.msra.mxu0 0.0
    %1398 = vmatprep.subr.mxu0 0.0
    %1399 = vmatpush1.msra.mxu0 0.0
    %1400 = vmatprep.subr.mxu0 0.0
    %1401 = vmatpush1.msra.mxu0 0.0
    %1402 = vmatprep.subr.mxu0 0.0
    %1403 = vmatpush1.msra.mxu0 0.0
    %1404 = vmatprep.subr.mxu0 0.0
    %1405 = vmatpush1.msra.mxu0 0.0
    %1406 = vmatprep.subr.mxu0 0.0
    %1407 = vmatpush1.msra.mxu0 0.0
    %1408 = vmatprep.subr.mxu0 0.0
    %1409 = vmatpush1.msra.mxu0 0.0
    %1410 = vmatprep.subr.mxu0 0.0
    %1411 = vmatpush1.msra.mxu0 0.0
    %1412 = vmatprep.subr.mxu0 0.0
    %1413 = vmatpush1.msra.mxu0 0.0
    %1414 = vmatprep.mubr.f32.mxu0 0.0
    %1415 = vmatmul.mubr.f32.gmra.mrb[0].mxu0 %v1348
    %v1416 = vpop.f32.mrb[0].mxu0
    %v1417 = vadd.f32 0.0, %v1416
    %v1418 = vpop.f32.mrb[0].mxu0
    %1419 = vdwg.mxu0
    %v1421 = vrot.slane %v1417, 7
    %v1423 = vadd.f32 %v1245, %v1421
    %v1424 = vxor.u32 %v1423, 2147483648
    %v1425 = vmul.f32 %v1424, 1.442695
    %v1426 = vpow.pop %v1425
    %v1427 = vadd.f32 %v1426, 1.0
    %v1428 = vrcp.pop %v1427
    %v1429 = vmul.f32 1.0, %v1428
    %v1430 = vtanh.pop %v1423
    %v1432 = vrot.slane %v1336, 7
    %v1434 = vmul.f32 %v1429, %v1432
    %1436 = vrot.lane.b32.xlu0 %v1430, 64
    %v1437 = vpop.permute.xlu0 %1436
    %v1439 = vmul.f32 %v1429, %v1437
    %1441 = vrot.lane.b32.xlu0 %v1439, 32
    %v1442 = vpop.permute.xlu0 %1441
    %v1444 = vadd.f32 %v1434, %v1442
    %v1445 = vtanh.pop %v1444
    %1447 = vrot.lane.b32.xlu0 %v1445, 64
    %v1448 = vpop.permute.xlu0 %1447
    %v1450 = vmul.f32 %v1429, %v1448
    %1452 = vrot.lane.b32.xlu0 %v1450, 32
    %v1453 = vpop.permute.xlu0 %1452
    %1455 = vst.msk [vmem:[#allocation2] sm:$0x2] %vm485, %v1453
    %v1456 = vrot.slane %v1450, 1
    %1457 = vrot.lane.b32.xlu0 %v1456, 32
    %v1458 = vpop.permute.xlu0 %1457
    %v1459 = vsel %vm273, %v1458, 0
    %1461 = vmatprep.subr.mxu0 0.0
    %1462 = vmatpush1.msra.mxu0 %v1164
    %1463 = vmatprep.subr.mxu0 0.0
    %1464 = vmatpush1.msra.mxu0 %v1165
    %1465 = vmatprep.subr.mxu0 0.0
    %1466 = vmatpush1.msra.mxu0 %v1166
    %1467 = vmatprep.subr.mxu0 0.0
    %1468 = vmatpush1.msra.mxu0 %v1167
    %1469 = vmatprep.subr.mxu0 0.0
    %1470 = vmatpush1.msra.mxu0 0.0
    %1471 = vmatprep.subr.mxu0 0.0
    %1472 = vmatpush1.msra.mxu0 0.0
    %1473 = vmatprep.subr.mxu0 0.0
    %1474 = vmatpush1.msra.mxu0 0.0
    %1475 = vmatprep.subr.mxu0 0.0
    %1476 = vmatpush1.msra.mxu0 0.0
    %1477 = vmatprep.subr.mxu0 0.0
    %1478 = vmatpush1.msra.mxu0 0.0
    %1479 = vmatprep.subr.mxu0 0.0
    %1480 = vmatpush1.msra.mxu0 0.0
    %1481 = vmatprep.subr.mxu0 0.0
    %1482 = vmatpush1.msra.mxu0 0.0
    %1483 = vmatprep.subr.mxu0 0.0
    %1484 = vmatpush1.msra.mxu0 0.0
    %1485 = vmatprep.subr.mxu0 0.0
    %1486 = vmatpush1.msra.mxu0 0.0
    %1487 = vmatprep.subr.mxu0 0.0
    %1488 = vmatpush1.msra.mxu0 0.0
    %1489 = vmatprep.subr.mxu0 0.0
    %1490 = vmatpush1.msra.mxu0 0.0
    %1491 = vmatprep.subr.mxu0 0.0
    %1492 = vmatpush1.msra.mxu0 0.0
    %1493 = vmatprep.subr.mxu0 0.0
    %1494 = vmatpush1.msra.mxu0 0.0
    %1495 = vmatprep.subr.mxu0 0.0
    %1496 = vmatpush1.msra.mxu0 0.0
    %1497 = vmatprep.subr.mxu0 0.0
    %1498 = vmatpush1.msra.mxu0 0.0
    %1499 = vmatprep.subr.mxu0 0.0
    %1500 = vmatpush1.msra.mxu0 0.0
    %1501 = vmatprep.subr.mxu0 0.0
    %1502 = vmatpush1.msra.mxu0 0.0
    %1503 = vmatprep.subr.mxu0 0.0
    %1504 = vmatpush1.msra.mxu0 0.0
    %1505 = vmatprep.subr.mxu0 0.0
    %1506 = vmatpush1.msra.mxu0 0.0
    %1507 = vmatprep.subr.mxu0 0.0
    %1508 = vmatpush1.msra.mxu0 0.0
    %1509 = vmatprep.subr.mxu0 0.0
    %1510 = vmatpush1.msra.mxu0 0.0
    %1511 = vmatprep.subr.mxu0 0.0
    %1512 = vmatpush1.msra.mxu0 0.0
    %1513 = vmatprep.subr.mxu0 0.0
    %1514 = vmatpush1.msra.mxu0 0.0
    %1515 = vmatprep.subr.mxu0 0.0
    %1516 = vmatpush1.msra.mxu0 0.0
    %1517 = vmatprep.subr.mxu0 0.0
    %1518 = vmatpush1.msra.mxu0 0.0
    %1519 = vmatprep.subr.mxu0 0.0
    %1520 = vmatpush1.msra.mxu0 0.0
    %1521 = vmatprep.subr.mxu0 0.0
    %1522 = vmatpush1.msra.mxu0 0.0
    %1523 = vmatprep.subr.mxu0 0.0
    %1524 = vmatpush1.msra.mxu0 0.0
    %1525 = vmatprep.mubr.f32.mxu0 0.0
    %1526 = vmatmul.mubr.f32.gmra.mrb[0].mxu0 %v1459
    %v1527 = vpop.f32.mrb[0].mxu0
    %v1528 = vadd.f32 0.0, %v1527
    %v1529 = vpop.f32.mrb[0].mxu0
    %1530 = vdwg.mxu0
    %v1532 = vrot.slane %v1528, 6
    %v1534 = vadd.f32 %v1245, %v1532
    %v1535 = vxor.u32 %v1534, 2147483648
    %v1536 = vmul.f32 %v1535, 1.442695
    %v1537 = vpow.pop %v1536
    %v1538 = vadd.f32 %v1537, 1.0
    %v1539 = vrcp.pop %v1538
    %v1540 = vmul.f32 1.0, %v1539
    %v1541 = vtanh.pop %v1534
    %v1543 = vrot.slane %v1444, 7
    %v1545 = vmul.f32 %v1540, %v1543
    %1547 = vrot.lane.b32.xlu0 %v1541, 64
    %v1548 = vpop.permute.xlu0 %1547
    %v1550 = vmul.f32 %v1540, %v1548
    %1552 = vrot.lane.b32.xlu0 %v1550, 32
    %v1553 = vpop.permute.xlu0 %1552
    %v1555 = vadd.f32 %v1545, %v1553
    %v1556 = vtanh.pop %v1555
    %1558 = vrot.lane.b32.xlu0 %v1556, 64
    %v1559 = vpop.permute.xlu0 %1558
    %v1561 = vmul.f32 %v1540, %v1559
    %1563 = vrot.lane.b32.xlu0 %v1561, 32
    %v1564 = vpop.permute.xlu0 %1563
    %1566 = vst.msk [vmem:[#allocation2] sm:$0x4] %vm597, %v1564
    %v1567 = vrot.slane %v1561, 2
    %1568 = vrot.lane.b32.xlu0 %v1567, 32
    %v1569 = vpop.permute.xlu0 %1568
    %v1570 = vsel %vm273, %v1569, 0
    %1572 = vmatprep.subr.mxu0 0.0
    %1573 = vmatpush1.msra.mxu0 %v1164
    %1574 = vmatprep.subr.mxu0 0.0
    %1575 = vmatpush1.msra.mxu0 %v1165
    %1576 = vmatprep.subr.mxu0 0.0
    %1577 = vmatpush1.msra.mxu0 %v1166
    %1578 = vmatprep.subr.mxu0 0.0
    %1579 = vmatpush1.msra.mxu0 %v1167
    %1580 = vmatprep.subr.mxu0 0.0
    %1581 = vmatpush1.msra.mxu0 0.0
    %1582 = vmatprep.subr.mxu0 0.0
    %1583 = vmatpush1.msra.mxu0 0.0
    %1584 = vmatprep.subr.mxu0 0.0
    %1585 = vmatpush1.msra.mxu0 0.0
    %1586 = vmatprep.subr.mxu0 0.0
    %1587 = vmatpush1.msra.mxu0 0.0
    %1588 = vmatprep.subr.mxu0 0.0
    %1589 = vmatpush1.msra.mxu0 0.0
    %1590 = vmatprep.subr.mxu0 0.0
    %1591 = vmatpush1.msra.mxu0 0.0
    %1592 = vmatprep.subr.mxu0 0.0
    %1593 = vmatpush1.msra.mxu0 0.0
    %1594 = vmatprep.subr.mxu0 0.0
    %1595 = vmatpush1.msra.mxu0 0.0
    %1596 = vmatprep.subr.mxu0 0.0
    %1597 = vmatpush1.msra.mxu0 0.0
    %1598 = vmatprep.subr.mxu0 0.0
    %1599 = vmatpush1.msra.mxu0 0.0
    %1600 = vmatprep.subr.mxu0 0.0
    %1601 = vmatpush1.msra.mxu0 0.0
    %1602 = vmatprep.subr.mxu0 0.0
    %1603 = vmatpush1.msra.mxu0 0.0
    %1604 = vmatprep.subr.mxu0 0.0
    %1605 = vmatpush1.msra.mxu0 0.0
    %1606 = vmatprep.subr.mxu0 0.0
    %1607 = vmatpush1.msra.mxu0 0.0
    %1608 = vmatprep.subr.mxu0 0.0
    %1609 = vmatpush1.msra.mxu0 0.0
    %1610 = vmatprep.subr.mxu0 0.0
    %1611 = vmatpush1.msra.mxu0 0.0
    %1612 = vmatprep.subr.mxu0 0.0
    %1613 = vmatpush1.msra.mxu0 0.0
    %1614 = vmatprep.subr.mxu0 0.0
    %1615 = vmatpush1.msra.mxu0 0.0
    %1616 = vmatprep.subr.mxu0 0.0
    %1617 = vmatpush1.msra.mxu0 0.0
    %1618 = vmatprep.subr.mxu0 0.0
    %1619 = vmatpush1.msra.mxu0 0.0
    %1620 = vmatprep.subr.mxu0 0.0
    %1621 = vmatpush1.msra.mxu0 0.0
    %1622 = vmatprep.subr.mxu0 0.0
    %1623 = vmatpush1.msra.mxu0 0.0
    %1624 = vmatprep.subr.mxu0 0.0
    %1625 = vmatpush1.msra.mxu0 0.0
    %1626 = vmatprep.subr.mxu0 0.0
    %1627 = vmatpush1.msra.mxu0 0.0
    %1628 = vmatprep.subr.mxu0 0.0
    %1629 = vmatpush1.msra.mxu0 0.0
    %1630 = vmatprep.subr.mxu0 0.0
    %1631 = vmatpush1.msra.mxu0 0.0
    %1632 = vmatprep.subr.mxu0 0.0
    %1633 = vmatpush1.msra.mxu0 0.0
    %1634 = vmatprep.subr.mxu0 0.0
    %1635 = vmatpush1.msra.mxu0 0.0
    %1636 = vmatprep.mubr.f32.mxu0 0.0
    %1637 = vmatmul.mubr.f32.gmra.mrb[0].mxu0 %v1570
    %v1638 = vpop.f32.mrb[0].mxu0
    %v1639 = vadd.f32 0.0, %v1638
    %v1640 = vpop.f32.mrb[0].mxu0
    %1641 = vdwg.mxu0
    %v1643 = vrot.slane %v1639, 5
    %v1645 = vadd.f32 %v1245, %v1643
    %v1646 = vxor.u32 %v1645, 2147483648
    %v1647 = vmul.f32 %v1646, 1.442695
    %v1648 = vpow.pop %v1647
    %v1649 = vadd.f32 %v1648, 1.0
    %v1650 = vrcp.pop %v1649
    %v1651 = vmul.f32 1.0, %v1650
    %v1652 = vtanh.pop %v1645
    %v1654 = vrot.slane %v1555, 7
    %v1656 = vmul.f32 %v1651, %v1654
    %1658 = vrot.lane.b32.xlu0 %v1652, 64
    %v1659 = vpop.permute.xlu0 %1658
    %v1661 = vmul.f32 %v1651, %v1659
    %1663 = vrot.lane.b32.xlu0 %v1661, 32
    %v1664 = vpop.permute.xlu0 %1663
    %v1666 = vadd.f32 %v1656, %v1664
    %v1667 = vtanh.pop %v1666
    %1669 = vrot.lane.b32.xlu0 %v1667, 64
    %v1670 = vpop.permute.xlu0 %1669
    %v1672 = vmul.f32 %v1651, %v1670
    %1674 = vrot.lane.b32.xlu0 %v1672, 32
    %v1675 = vpop.permute.xlu0 %1674
    %1677 = vst.msk [vmem:[#allocation2] sm:$0x8] %vm709, %v1675
    %v1678 = vrot.slane %v1672, 3
    %1679 = vrot.lane.b32.xlu0 %v1678, 32
    %v1680 = vpop.permute.xlu0 %1679
    %v1681 = vsel %vm273, %v1680, 0
    %1683 = vmatprep.subr.mxu0 0.0
    %1684 = vmatpush1.msra.mxu0 %v1164
    %1685 = vmatprep.subr.mxu0 0.0
    %1686 = vmatpush1.msra.mxu0 %v1165
    %1687 = vmatprep.subr.mxu0 0.0
    %1688 = vmatpush1.msra.mxu0 %v1166
    %1689 = vmatprep.subr.mxu0 0.0
    %1690 = vmatpush1.msra.mxu0 %v1167
    %1691 = vmatprep.subr.mxu0 0.0
    %1692 = vmatpush1.msra.mxu0 0.0
    %1693 = vmatprep.subr.mxu0 0.0
    %1694 = vmatpush1.msra.mxu0 0.0
    %1695 = vmatprep.subr.mxu0 0.0
    %1696 = vmatpush1.msra.mxu0 0.0
    %1697 = vmatprep.subr.mxu0 0.0
    %1698 = vmatpush1.msra.mxu0 0.0
    %1699 = vmatprep.subr.mxu0 0.0
    %1700 = vmatpush1.msra.mxu0 0.0
    %1701 = vmatprep.subr.mxu0 0.0
    %1702 = vmatpush1.msra.mxu0 0.0
    %1703 = vmatprep.subr.mxu0 0.0
    %1704 = vmatpush1.msra.mxu0 0.0
    %1705 = vmatprep.subr.mxu0 0.0
    %1706 = vmatpush1.msra.mxu0 0.0
    %1707 = vmatprep.subr.mxu0 0.0
    %1708 = vmatpush1.msra.mxu0 0.0
    %1709 = vmatprep.subr.mxu0 0.0
    %1710 = vmatpush1.msra.mxu0 0.0
    %1711 = vmatprep.subr.mxu0 0.0
    %1712 = vmatpush1.msra.mxu0 0.0
    %1713 = vmatprep.subr.mxu0 0.0
    %1714 = vmatpush1.msra.mxu0 0.0
    %1715 = vmatprep.subr.mxu0 0.0
    %1716 = vmatpush1.msra.mxu0 0.0
    %1717 = vmatprep.subr.mxu0 0.0
    %1718 = vmatpush1.msra.mxu0 0.0
    %1719 = vmatprep.subr.mxu0 0.0
    %1720 = vmatpush1.msra.mxu0 0.0
    %1721 = vmatprep.subr.mxu0 0.0
    %1722 = vmatpush1.msra.mxu0 0.0
    %1723 = vmatprep.subr.mxu0 0.0
    %1724 = vmatpush1.msra.mxu0 0.0
    %1725 = vmatprep.subr.mxu0 0.0
    %1726 = vmatpush1.msra.mxu0 0.0
    %1727 = vmatprep.subr.mxu0 0.0
    %1728 = vmatpush1.msra.mxu0 0.0
    %1729 = vmatprep.subr.mxu0 0.0
    %1730 = vmatpush1.msra.mxu0 0.0
    %1731 = vmatprep.subr.mxu0 0.0
    %1732 = vmatpush1.msra.mxu0 0.0
    %1733 = vmatprep.subr.mxu0 0.0
    %1734 = vmatpush1.msra.mxu0 0.0
    %1735 = vmatprep.subr.mxu0 0.0
    %1736 = vmatpush1.msra.mxu0 0.0
    %1737 = vmatprep.subr.mxu0 0.0
    %1738 = vmatpush1.msra.mxu0 0.0
    %1739 = vmatprep.subr.mxu0 0.0
    %1740 = vmatpush1.msra.mxu0 0.0
    %1741 = vmatprep.subr.mxu0 0.0
    %1742 = vmatpush1.msra.mxu0 0.0
    %1743 = vmatprep.subr.mxu0 0.0
    %1744 = vmatpush1.msra.mxu0 0.0
    %1745 = vmatprep.subr.mxu0 0.0
    %1746 = vmatpush1.msra.mxu0 0.0
    %1747 = vmatprep.mubr.f32.mxu0 0.0
    %1748 = vmatmul.mubr.f32.gmra.mrb[0].mxu0 %v1681
    %v1749 = vpop.f32.mrb[0].mxu0
    %v1750 = vadd.f32 0.0, %v1749
    %v1751 = vpop.f32.mrb[0].mxu0
    %1752 = vdwg.mxu0
    %v1754 = vrot.slane %v1750, 4
    %v1756 = vadd.f32 %v1245, %v1754
    %v1757 = vxor.u32 %v1756, 2147483648
    %v1758 = vmul.f32 %v1757, 1.442695
    %v1759 = vpow.pop %v1758
    %v1760 = vadd.f32 %v1759, 1.0
    %v1761 = vrcp.pop %v1760
    %v1762 = vmul.f32 1.0, %v1761
    %v1763 = vtanh.pop %v1756
    %v1765 = vrot.slane %v1666, 7
    %v1767 = vmul.f32 %v1762, %v1765
    %1769 = vrot.lane.b32.xlu0 %v1763, 64
    %v1770 = vpop.permute.xlu0 %1769
    %v1772 = vmul.f32 %v1762, %v1770
    %1774 = vrot.lane.b32.xlu0 %v1772, 32
    %v1775 = vpop.permute.xlu0 %1774
    %v1777 = vadd.f32 %v1767, %v1775
    %v1778 = vtanh.pop %v1777
    %1780 = vrot.lane.b32.xlu0 %v1778, 64
    %v1781 = vpop.permute.xlu0 %1780
    %v1783 = vmul.f32 %v1762, %v1781
    %1785 = vrot.lane.b32.xlu0 %v1783, 32
    %v1786 = vpop.permute.xlu0 %1785
    %1788 = vst.msk [vmem:[#allocation2] sm:$0x10] %vm821, %v1786
    %v1789 = vrot.slane %v1783, 4
    %1790 = vrot.lane.b32.xlu0 %v1789, 32
    %v1791 = vpop.permute.xlu0 %1790
    %v1792 = vsel %vm273, %v1791, 0
    %1794 = vmatprep.subr.mxu0 0.0
    %1795 = vmatpush1.msra.mxu0 %v1164
    %1796 = vmatprep.subr.mxu0 0.0
    %1797 = vmatpush1.msra.mxu0 %v1165
    %1798 = vmatprep.subr.mxu0 0.0
    %1799 = vmatpush1.msra.mxu0 %v1166
    %1800 = vmatprep.subr.mxu0 0.0
    %1801 = vmatpush1.msra.mxu0 %v1167
    %1802 = vmatprep.subr.mxu0 0.0
    %1803 = vmatpush1.msra.mxu0 0.0
    %1804 = vmatprep.subr.mxu0 0.0
    %1805 = vmatpush1.msra.mxu0 0.0
    %1806 = vmatprep.subr.mxu0 0.0
    %1807 = vmatpush1.msra.mxu0 0.0
    %1808 = vmatprep.subr.mxu0 0.0
    %1809 = vmatpush1.msra.mxu0 0.0
    %1810 = vmatprep.subr.mxu0 0.0
    %1811 = vmatpush1.msra.mxu0 0.0
    %1812 = vmatprep.subr.mxu0 0.0
    %1813 = vmatpush1.msra.mxu0 0.0
    %1814 = vmatprep.subr.mxu0 0.0
    %1815 = vmatpush1.msra.mxu0 0.0
    %1816 = vmatprep.subr.mxu0 0.0
    %1817 = vmatpush1.msra.mxu0 0.0
    %1818 = vmatprep.subr.mxu0 0.0
    %1819 = vmatpush1.msra.mxu0 0.0
    %1820 = vmatprep.subr.mxu0 0.0
    %1821 = vmatpush1.msra.mxu0 0.0
    %1822 = vmatprep.subr.mxu0 0.0
    %1823 = vmatpush1.msra.mxu0 0.0
    %1824 = vmatprep.subr.mxu0 0.0
    %1825 = vmatpush1.msra.mxu0 0.0
    %1826 = vmatprep.subr.mxu0 0.0
    %1827 = vmatpush1.msra.mxu0 0.0
    %1828 = vmatprep.subr.mxu0 0.0
    %1829 = vmatpush1.msra.mxu0 0.0
    %1830 = vmatprep.subr.mxu0 0.0
    %1831 = vmatpush1.msra.mxu0 0.0
    %1832 = vmatprep.subr.mxu0 0.0
    %1833 = vmatpush1.msra.mxu0 0.0
    %1834 = vmatprep.subr.mxu0 0.0
    %1835 = vmatpush1.msra.mxu0 0.0
    %1836 = vmatprep.subr.mxu0 0.0
    %1837 = vmatpush1.msra.mxu0 0.0
    %1838 = vmatprep.subr.mxu0 0.0
    %1839 = vmatpush1.msra.mxu0 0.0
    %1840 = vmatprep.subr.mxu0 0.0
    %1841 = vmatpush1.msra.mxu0 0.0
    %1842 = vmatprep.subr.mxu0 0.0
    %1843 = vmatpush1.msra.mxu0 0.0
    %1844 = vmatprep.subr.mxu0 0.0
    %1845 = vmatpush1.msra.mxu0 0.0
    %1846 = vmatprep.subr.mxu0 0.0
    %1847 = vmatpush1.msra.mxu0 0.0
    %1848 = vmatprep.subr.mxu0 0.0
    %1849 = vmatpush1.msra.mxu0 0.0
    %1850 = vmatprep.subr.mxu0 0.0
    %1851 = vmatpush1.msra.mxu0 0.0
    %1852 = vmatprep.subr.mxu0 0.0
    %1853 = vmatpush1.msra.mxu0 0.0
    %1854 = vmatprep.subr.mxu0 0.0
    %1855 = vmatpush1.msra.mxu0 0.0
    %1856 = vmatprep.subr.mxu0 0.0
    %1857 = vmatpush1.msra.mxu0 0.0
    %1858 = vmatprep.mubr.f32.mxu0 0.0
    %1859 = vmatmul.mubr.f32.gmra.mrb[0].mxu0 %v1792
    %v1860 = vpop.f32.mrb[0].mxu0
    %v1861 = vadd.f32 0.0, %v1860
    %v1862 = vpop.f32.mrb[0].mxu0
    %1863 = vdwg.mxu0
    %v1865 = vrot.slane %v1861, 3
    %v1867 = vadd.f32 %v1245, %v1865
    %v1868 = vxor.u32 %v1867, 2147483648
    %v1869 = vmul.f32 %v1868, 1.442695
    %v1870 = vpow.pop %v1869
    %v1871 = vadd.f32 %v1870, 1.0
    %v1872 = vrcp.pop %v1871
    %v1873 = vmul.f32 1.0, %v1872
    %v1874 = vtanh.pop %v1867
    %v1876 = vrot.slane %v1777, 7
    %v1878 = vmul.f32 %v1873, %v1876
    %1880 = vrot.lane.b32.xlu0 %v1874, 64
    %v1881 = vpop.permute.xlu0 %1880
    %v1883 = vmul.f32 %v1873, %v1881
    %1885 = vrot.lane.b32.xlu0 %v1883, 32
    %v1886 = vpop.permute.xlu0 %1885
    %v1888 = vadd.f32 %v1878, %v1886
    %v1889 = vtanh.pop %v1888
    %1891 = vrot.lane.b32.xlu0 %v1889, 64
    %v1892 = vpop.permute.xlu0 %1891
    %v1894 = vmul.f32 %v1873, %v1892
    %1896 = vrot.lane.b32.xlu0 %v1894, 32
    %v1897 = vpop.permute.xlu0 %1896
    %1899 = vst.msk [vmem:[#allocation2] sm:$0x20] %vm933, %v1897
    %v1900 = vrot.slane %v1894, 5
    %1901 = vrot.lane.b32.xlu0 %v1900, 32
    %v1902 = vpop.permute.xlu0 %1901
    %v1903 = vsel %vm273, %v1902, 0
    %1905 = vmatprep.subr.mxu0 0.0
    %1906 = vmatpush1.msra.mxu0 %v1164
    %1907 = vmatprep.subr.mxu0 0.0
    %1908 = vmatpush1.msra.mxu0 %v1165
    %1909 = vmatprep.subr.mxu0 0.0
    %1910 = vmatpush1.msra.mxu0 %v1166
    %1911 = vmatprep.subr.mxu0 0.0
    %1912 = vmatpush1.msra.mxu0 %v1167
    %1913 = vmatprep.subr.mxu0 0.0
    %1914 = vmatpush1.msra.mxu0 0.0
    %1915 = vmatprep.subr.mxu0 0.0
    %1916 = vmatpush1.msra.mxu0 0.0
    %1917 = vmatprep.subr.mxu0 0.0
    %1918 = vmatpush1.msra.mxu0 0.0
    %1919 = vmatprep.subr.mxu0 0.0
    %1920 = vmatpush1.msra.mxu0 0.0
    %1921 = vmatprep.subr.mxu0 0.0
    %1922 = vmatpush1.msra.mxu0 0.0
    %1923 = vmatprep.subr.mxu0 0.0
    %1924 = vmatpush1.msra.mxu0 0.0
    %1925 = vmatprep.subr.mxu0 0.0
    %1926 = vmatpush1.msra.mxu0 0.0
    %1927 = vmatprep.subr.mxu0 0.0
    %1928 = vmatpush1.msra.mxu0 0.0
    %1929 = vmatprep.subr.mxu0 0.0
    %1930 = vmatpush1.msra.mxu0 0.0
    %1931 = vmatprep.subr.mxu0 0.0
    %1932 = vmatpush1.msra.mxu0 0.0
    %1933 = vmatprep.subr.mxu0 0.0
    %1934 = vmatpush1.msra.mxu0 0.0
    %1935 = vmatprep.subr.mxu0 0.0
    %1936 = vmatpush1.msra.mxu0 0.0
    %1937 = vmatprep.subr.mxu0 0.0
    %1938 = vmatpush1.msra.mxu0 0.0
    %1939 = vmatprep.subr.mxu0 0.0
    %1940 = vmatpush1.msra.mxu0 0.0
    %1941 = vmatprep.subr.mxu0 0.0
    %1942 = vmatpush1.msra.mxu0 0.0
    %1943 = vmatprep.subr.mxu0 0.0
    %1944 = vmatpush1.msra.mxu0 0.0
    %1945 = vmatprep.subr.mxu0 0.0
    %1946 = vmatpush1.msra.mxu0 0.0
    %1947 = vmatprep.subr.mxu0 0.0
    %1948 = vmatpush1.msra.mxu0 0.0
    %1949 = vmatprep.subr.mxu0 0.0
    %1950 = vmatpush1.msra.mxu0 0.0
    %1951 = vmatprep.subr.mxu0 0.0
    %1952 = vmatpush1.msra.mxu0 0.0
    %1953 = vmatprep.subr.mxu0 0.0
    %1954 = vmatpush1.msra.mxu0 0.0
    %1955 = vmatprep.subr.mxu0 0.0
    %1956 = vmatpush1.msra.mxu0 0.0
    %1957 = vmatprep.subr.mxu0 0.0
    %1958 = vmatpush1.msra.mxu0 0.0
    %1959 = vmatprep.subr.mxu0 0.0
    %1960 = vmatpush1.msra.mxu0 0.0
    %1961 = vmatprep.subr.mxu0 0.0
    %1962 = vmatpush1.msra.mxu0 0.0
    %1963 = vmatprep.subr.mxu0 0.0
    %1964 = vmatpush1.msra.mxu0 0.0
    %1965 = vmatprep.subr.mxu0 0.0
    %1966 = vmatpush1.msra.mxu0 0.0
    %1967 = vmatprep.subr.mxu0 0.0
    %1968 = vmatpush1.msra.mxu0 0.0
    %1969 = vmatprep.mubr.f32.mxu0 0.0
    %1970 = vmatmul.mubr.f32.gmra.mrb[0].mxu0 %v1903
    %v1971 = vpop.f32.mrb[0].mxu0
    %v1972 = vadd.f32 0.0, %v1971
    %v1973 = vpop.f32.mrb[0].mxu0
    %1974 = vdwg.mxu0
    %v1976 = vrot.slane %v1972, 2
    %v1978 = vadd.f32 %v1245, %v1976
    %v1979 = vxor.u32 %v1978, 2147483648
    %v1980 = vmul.f32 %v1979, 1.442695
    %v1981 = vpow.pop %v1980
    %v1982 = vadd.f32 %v1981, 1.0
    %v1983 = vrcp.pop %v1982
    %v1984 = vmul.f32 1.0, %v1983
    %v1985 = vtanh.pop %v1978
    %v1987 = vrot.slane %v1888, 7
    %v1989 = vmul.f32 %v1984, %v1987
    %1991 = vrot.lane.b32.xlu0 %v1985, 64
    %v1992 = vpop.permute.xlu0 %1991
    %v1994 = vmul.f32 %v1984, %v1992
    %1996 = vrot.lane.b32.xlu0 %v1994, 32
    %v1997 = vpop.permute.xlu0 %1996
    %v1999 = vadd.f32 %v1989, %v1997
    %v2000 = vtanh.pop %v1999
    %2002 = vrot.lane.b32.xlu0 %v2000, 64
    %v2003 = vpop.permute.xlu0 %2002
    %v2005 = vmul.f32 %v1984, %v2003
    %2007 = vrot.lane.b32.xlu0 %v2005, 32
    %v2008 = vpop.permute.xlu0 %2007
    %2010 = vst.msk [vmem:[#allocation2] sm:$0x40] %vm1045, %v2008
    %v2011 = vrot.slane %v2005, 6
    %2012 = vrot.lane.b32.xlu0 %v2011, 32
    %v2013 = vpop.permute.xlu0 %2012
    %v2014 = vsel %vm273, %v2013, 0
    %2016 = vmatprep.subr.mxu0 0.0
    %2017 = vmatpush1.msra.mxu0 %v1164
    %2018 = vmatprep.subr.mxu0 0.0
    %2019 = vmatpush1.msra.mxu0 %v1165
    %2020 = vmatprep.subr.mxu0 0.0
    %2021 = vmatpush1.msra.mxu0 %v1166
    %2022 = vmatprep.subr.mxu0 0.0
    %2023 = vmatpush1.msra.mxu0 %v1167
    %2024 = vmatprep.subr.mxu0 0.0
    %2025 = vmatpush1.msra.mxu0 0.0
    %2026 = vmatprep.subr.mxu0 0.0
    %2027 = vmatpush1.msra.mxu0 0.0
    %2028 = vmatprep.subr.mxu0 0.0
    %2029 = vmatpush1.msra.mxu0 0.0
    %2030 = vmatprep.subr.mxu0 0.0
    %2031 = vmatpush1.msra.mxu0 0.0
    %2032 = vmatprep.subr.mxu0 0.0
    %2033 = vmatpush1.msra.mxu0 0.0
    %2034 = vmatprep.subr.mxu0 0.0
    %2035 = vmatpush1.msra.mxu0 0.0
    %2036 = vmatprep.subr.mxu0 0.0
    %2037 = vmatpush1.msra.mxu0 0.0
    %2038 = vmatprep.subr.mxu0 0.0
    %2039 = vmatpush1.msra.mxu0 0.0
    %2040 = vmatprep.subr.mxu0 0.0
    %2041 = vmatpush1.msra.mxu0 0.0
    %2042 = vmatprep.subr.mxu0 0.0
    %2043 = vmatpush1.msra.mxu0 0.0
    %2044 = vmatprep.subr.mxu0 0.0
    %2045 = vmatpush1.msra.mxu0 0.0
    %2046 = vmatprep.subr.mxu0 0.0
    %2047 = vmatpush1.msra.mxu0 0.0
    %2048 = vmatprep.subr.mxu0 0.0
    %2049 = vmatpush1.msra.mxu0 0.0
    %2050 = vmatprep.subr.mxu0 0.0
    %2051 = vmatpush1.msra.mxu0 0.0
    %2052 = vmatprep.subr.mxu0 0.0
    %2053 = vmatpush1.msra.mxu0 0.0
    %2054 = vmatprep.subr.mxu0 0.0
    %2055 = vmatpush1.msra.mxu0 0.0
    %2056 = vmatprep.subr.mxu0 0.0
    %2057 = vmatpush1.msra.mxu0 0.0
    %2058 = vmatprep.subr.mxu0 0.0
    %2059 = vmatpush1.msra.mxu0 0.0
    %2060 = vmatprep.subr.mxu0 0.0
    %2061 = vmatpush1.msra.mxu0 0.0
    %2062 = vmatprep.subr.mxu0 0.0
    %2063 = vmatpush1.msra.mxu0 0.0
    %2064 = vmatprep.subr.mxu0 0.0
    %2065 = vmatpush1.msra.mxu0 0.0
    %2066 = vmatprep.subr.mxu0 0.0
    %2067 = vmatpush1.msra.mxu0 0.0
    %2068 = vmatprep.subr.mxu0 0.0
    %2069 = vmatpush1.msra.mxu0 0.0
    %2070 = vmatprep.subr.mxu0 0.0
    %2071 = vmatpush1.msra.mxu0 0.0
    %2072 = vmatprep.subr.mxu0 0.0
    %2073 = vmatpush1.msra.mxu0 0.0
    %2074 = vmatprep.subr.mxu0 0.0
    %2075 = vmatpush1.msra.mxu0 0.0
    %2076 = vmatprep.subr.mxu0 0.0
    %2077 = vmatpush1.msra.mxu0 0.0
    %2078 = vmatprep.subr.mxu0 0.0
    %2079 = vmatpush1.msra.mxu0 0.0
    %2080 = vmatprep.mubr.f32.mxu0 0.0
    %2081 = vmatmul.mubr.f32.gmra.mrb[0].mxu0 %v2014
    %v2082 = vpop.f32.mrb[0].mxu0
    %v2083 = vadd.f32 0.0, %v2082
    %v2084 = vpop.f32.mrb[0].mxu0
    %2085 = vdwg.mxu0
    %v2087 = vrot.slane %v2083, 1
    %v2089 = vadd.f32 %v1245, %v2087
    %v2090 = vxor.u32 %v2089, 2147483648
    %v2091 = vmul.f32 %v2090, 1.442695
    %v2092 = vpow.pop %v2091
    %v2093 = vadd.f32 %v2092, 1.0
    %v2094 = vrcp.pop %v2093
    %v2095 = vmul.f32 1.0, %v2094
    %v2096 = vtanh.pop %v2089
    %v2098 = vrot.slane %v1999, 7
    %v2100 = vmul.f32 %v2095, %v2098
    %2102 = vrot.lane.b32.xlu0 %v2096, 64
    %v2103 = vpop.permute.xlu0 %2102
    %v2105 = vmul.f32 %v2095, %v2103
    %2107 = vrot.lane.b32.xlu0 %v2105, 32
    %v2108 = vpop.permute.xlu0 %2107
    %v2110 = vadd.f32 %v2100, %v2108
    %v2111 = vtanh.pop %v2110
    %2113 = vrot.lane.b32.xlu0 %v2111, 64
    %v2114 = vpop.permute.xlu0 %2113
    %v2116 = vmul.f32 %v2095, %v2114
    %2118 = vrot.lane.b32.xlu0 %v2116, 32
    %v2119 = vpop.permute.xlu0 %2118
    %2121 = vst.msk [vmem:[#allocation2] sm:$0x80] %vm1157, %v2119
    %v2122 = vld [vmem:[#allocation2] sm:$0xff]
    %v2123 = vsel %vm273, %v2122, 0.0
    %v2124 = vrot.slane %v2123, 4
    %v2125 = vadd.f32 %v2123, %v2124
    %v2126 = vrot.slane %v2125, 2
    %v2127 = vadd.f32 %v2125, %v2126
    %v2128 = vrot.slane %v2127, 1
    %v2129 = vadd.f32 %v2127, %v2128
    %v2130 = vrcp.pop 8.0
    %v2131 = vmul.f32 %v2129, %v2130
    %v2132 = vsub.f32 %v2122, %v2131
    %v2133 = vmul.f32 %v2132, %v2132
    %v2134 = vsel %vm273, %v2133, 0.0
    %v2135 = vrot.slane %v2134, 4
    %v2136 = vadd.f32 %v2134, %v2135
    %v2137 = vrot.slane %v2136, 2
    %v2138 = vadd.f32 %v2136, %v2137
    %v2139 = vrot.slane %v2138, 1
    %v2140 = vadd.f32 %v2138, %v2139
    %v2141 = vmul.f32 %v2140, %v2130
    %v2142 = vld [vmem:[%s9] sm:$0x1]
    %v2143 = vadd.f32 %v2141, 1e-05
    %v2144 = vrsqrt.pop %v2143
    %v2145 = vmul.f32 %v2142, %v2144
    %v2146 = vld [vmem:[%s10] sm:$0x1]
    %v2147 = vmul.f32 %v2131, %v2145
    %v2148 = vsub.f32 %v2146, %v2147
    %v2150 = vlaneseq
    %v2151 = vshrl.u32 %v2150, 7
    %v2152 = vsub.s32 0, %v2151
    %v2153 = vrot.slane %v2145, %v2152
    %v2155 = vmul.f32 %v2122, %v2153
    %v2157 = vlaneseq
    %v2158 = vshrl.u32 %v2157, 7
    %v2159 = vsub.s32 0, %v2158
    %v2160 = vrot.slane %v2148, %v2159
    %v2162 = vadd.f32 %v2155, %v2160
    %v2163 = vmax.f32 %v2162, 0.0
    %v2164 = vld [vmem:[%s11] sm:$0xff]
    %v2165 = vld [vmem:[%s11 + $0x8] sm:$0xff]
    %v2166 = vld [vmem:[%s11 + $0x10] sm:$0xff]
    %v2167 = vld [vmem:[%s11 + $0x18] sm:$0xff]
    %v2168 = vld [vmem:[%s12] sm:$0x1]
    %v2170 = vlaneseq
    %v2171 = vshrl.u32 %v2170, 7
    %v2172 = vsub.s32 0, %v2171
    %v2173 = vrot.slane %v2168, %v2172
    %v2176 = vsel %vm273, %v2163, 0
    %2178 = vmatprep.subr.mxu0 0.0
    %2179 = vmatpush1.msra.mxu0 %v2164
    %2180 = vmatprep.subr.mxu0 0.0
    %2181 = vmatpush1.msra.mxu0 %v2165
    %2182 = vmatprep.subr.mxu0 0.0
    %2183 = vmatpush1.msra.mxu0 %v2166
    %2184 = vmatprep.subr.mxu0 0.0
    %2185 = vmatpush1.msra.mxu0 %v2167
    %2186 = vmatprep.subr.mxu0 0.0
    %2187 = vmatpush1.msra.mxu0 0.0
    %2188 = vmatprep.subr.mxu0 0.0
    %2189 = vmatpush1.msra.mxu0 0.0
    %2190 = vmatprep.subr.mxu0 0.0
    %2191 = vmatpush1.msra.mxu0 0.0
    %2192 = vmatprep.subr.mxu0 0.0
    %2193 = vmatpush1.msra.mxu0 0.0
    %2194 = vmatprep.subr.mxu0 0.0
    %2195 = vmatpush1.msra.mxu0 0.0
    %2196 = vmatprep.subr.mxu0 0.0
    %2197 = vmatpush1.msra.mxu0 0.0
    %2198 = vmatprep.subr.mxu0 0.0
    %2199 = vmatpush1.msra.mxu0 0.0
    %2200 = vmatprep.subr.mxu0 0.0
    %2201 = vmatpush1.msra.mxu0 0.0
    %2202 = vmatprep.subr.mxu0 0.0
    %2203 = vmatpush1.msra.mxu0 0.0
    %2204 = vmatprep.subr.mxu0 0.0
    %2205 = vmatpush1.msra.mxu0 0.0
    %2206 = vmatprep.subr.mxu0 0.0
    %2207 = vmatpush1.msra.mxu0 0.0
    %2208 = vmatprep.subr.mxu0 0.0
    %2209 = vmatpush1.msra.mxu0 0.0
    %2210 = vmatprep.subr.mxu0 0.0
    %2211 = vmatpush1.msra.mxu0 0.0
    %2212 = vmatprep.subr.mxu0 0.0
    %2213 = vmatpush1.msra.mxu0 0.0
    %2214 = vmatprep.subr.mxu0 0.0
    %2215 = vmatpush1.msra.mxu0 0.0
    %2216 = vmatprep.subr.mxu0 0.0
    %2217 = vmatpush1.msra.mxu0 0.0
    %2218 = vmatprep.subr.mxu0 0.0
    %2219 = vmatpush1.msra.mxu0 0.0
    %2220 = vmatprep.subr.mxu0 0.0
    %2221 = vmatpush1.msra.mxu0 0.0
    %2222 = vmatprep.subr.mxu0 0.0
    %2223 = vmatpush1.msra.mxu0 0.0
    %2224 = vmatprep.subr.mxu0 0.0
    %2225 = vmatpush1.msra.mxu0 0.0
    %2226 = vmatprep.subr.mxu0 0.0
    %2227 = vmatpush1.msra.mxu0 0.0
    %2228 = vmatprep.subr.mxu0 0.0
    %2229 = vmatpush1.msra.mxu0 0.0
    %2230 = vmatprep.subr.mxu0 0.0
    %2231 = vmatpush1.msra.mxu0 0.0
    %2232 = vmatprep.subr.mxu0 0.0
    %2233 = vmatpush1.msra.mxu0 0.0
    %2234 = vmatprep.subr.mxu0 0.0
    %2235 = vmatpush1.msra.mxu0 0.0
    %2236 = vmatprep.subr.mxu0 0.0
    %2237 = vmatpush1.msra.mxu0 0.0
    %2238 = vmatprep.subr.mxu0 0.0
    %2239 = vmatpush1.msra.mxu0 0.0
    %2240 = vmatprep.subr.mxu0 0.0
    %2241 = vmatpush1.msra.mxu0 0.0
    %2242 = vmatprep.mubr.f32.mxu0 0.0
    %2243 = vmatmul.mubr.f32.gmra.mrb[0].mxu0 %v2176
    %v2244 = vpop.f32.mrb[0].mxu0
    %v2245 = vadd.f32 %v2173, %v2244
    %v2246 = vpop.f32.mrb[0].mxu0
    %2247 = vdwg.mxu0
    %v2248 = vxor.u32 %v2245, 2147483648
    %v2249 = vmul.f32 %v2248, 1.442695
    %v2250 = vpow.pop %v2249
    %v2251 = vadd.f32 %v2250, 1.0
    %v2252 = vrcp.pop %v2251
    %v2253 = vmul.f32 1.0, %v2252
    %vm2254 = vcmask 31744
    %2255 = vst.msk [vmem:[%s13] sm:$0xff] %vm2254, %v2253
    // Predicated region
    $region70: #{tpu_custom_call.1} parent=1 // pred_check
      _
    $region71: #{tpu_custom_call.1} parent=1 // pred_check_branch
      %2257 = sbr.rel (0) target = $region73
    $region72: #{tpu_custom_call.1} parent=1 // pred_region
      _
    $region73: #{tpu_custom_call.1} parent=1 // pred_fallthru
      _
    // Predicated region
    $region74: #{tpu_custom_call.1} parent=1 // pred_check
      _
    $region75: #{tpu_custom_call.1} parent=1 // pred_check_branch
      %2259 = sbr.rel (0) target = $region77
    $region76: #{tpu_custom_call.1} parent=1 // pred_region
      _
    $region77: #{tpu_custom_call.1} parent=1 // pred_fallthru
      _
    %2260 = vsyncpa [#allocation4], 1
    %2261 = vsyncpa [#allocation6], 1
    %2262 = vsyncpa [#allocation9], 1

</llo_original>
